<compile_context>
chip_gen: v7x
topology: tpu7x:2x2x1
jax: 0.10.0
libtpu: 0.0.40
codegen_flags: <defaults>
</compile_context>

<pallas_src>
import jax
import jax.numpy as jnp
from jax.experimental import pallas as pl
from jax.experimental.pallas import tpu as pltpu


def attention_kernel(gam_ref, q_ref, keyst_ref, v3_ref, x3_ref, out_ref):
    n_pad = v3_ref.shape[2]

    q = q_ref[0]            # (Cq_pad, TQ)      bf16 query tile (bias chan = 1)
    keys_t = keyst_ref[0]   # (2*N_pad, Cq_pad) bf16 [k2 ; q3] pre-transposed
    v3 = v3_ref[0]          # (C_half, N_pad)   bf16 values
    x3_t = x3_ref[0]        # (C_half, TQ)      f32 residual slice

    # One fused, canonical MXU matmul for both energy maps (transposed layout):
    #   e[m, t] = sum_c keys_t[m, c] * q[c, t]
    e = jnp.dot(keys_t, q, preferred_element_type=jnp.float32)   # (2*N_pad, TQ)
    e32 = e[:n_pad]
    e33 = e[n_pad:]

    # Softmax over the key (sublane) axis; gamma folded into the per-column
    # normalizer so only one full-tile scale per map is needed.
    def softmax_cols(ee, gamma):
        m = jnp.max(ee, axis=0, keepdims=True)                   # (1, TQ)
        p = jnp.exp(ee - m)                                      # (N_pad, TQ)
        s = jnp.sum(p, axis=0, keepdims=True)                    # (1, TQ)
        return p, gamma * pl.reciprocal(s, approx=True)

    p32, w32 = softmax_cols(e32, gam_ref[0])
    p33, w33 = softmax_cols(e33, gam_ref[1])
    a_t = (p32 * w32 + p33 * w33).astype(jnp.bfloat16)           # (N_pad, TQ)

    # Canonical (C_half, N_pad) x (N_pad, TQ) output matmul; lane-dense store.
    out = jnp.dot(v3, a_t, preferred_element_type=jnp.float32)   # (C_half, TQ)
    out_ref[0] = out + x3_t


def _round_up(x, m):
    return (x + m - 1) // m * m


def _pick_tq(n_pad, batch):
    """Largest lane-dense query tile (multiple of 128 dividing n_pad) whose
    softmax intermediates (~32 B per (key, query) element across the two f32
    maps, exp temporaries and the bf16 combined map) stay under ~20 MiB, so
    the per-step footprint fits v7x's 64 MiB VMEM with headroom (and the
    explicit 48 MiB vmem_limit below)."""
    budget = 20 * 1024 * 1024
    cap = max(128, min(512, (budget // (32 * n_pad)) // 128 * 128))
    tq = min(n_pad, cap)
    while n_pad % tq:
        tq -= 128
    # Ensure >= 2 grid points so both TensorCores are used on 2-TC chips.
    if batch == 1 and tq == n_pad and n_pad >= 256 and (n_pad // 2) % 128 == 0:
        tq = n_pad // 2
    return tq


def _pad_last(a, n_pad):
    n = a.shape[-1]
    if n == n_pad:
        return a
    return jnp.pad(a, [(0, 0)] * (a.ndim - 1) + [(0, n_pad - n)])


def _make_keys_t(k, n, n_pad, cq_pad):
    """(B, Cq, N) f32 -> (B, N_pad, Cq_pad) bf16, transposed, with a mask-bias
    channel (last): 0 for real keys, -1e9 for padded keys (zero softmax wt)."""
    b, cq, _ = k.shape
    kp = _pad_last(k, n_pad)                                      # (B, Cq, N_pad)
    chan_pad = jnp.zeros((b, cq_pad - cq - 1, n_pad), k.dtype)
    col = jnp.arange(n_pad)
    bias = jnp.where(col < n, 0.0, -1e9).astype(k.dtype)
    bias = jnp.broadcast_to(bias[None, None, :], (b, 1, n_pad))
    kp = jnp.concatenate([kp, chan_pad, bias], axis=1)            # (B, Cq_pad, N_pad)
    return jnp.transpose(kp, (0, 2, 1)).astype(jnp.bfloat16)


def _make_q(q3, n_pad, cq_pad):
    """(B, Cq, N) f32 -> (B, Cq_pad, N_pad) bf16 with constant-1 bias chan."""
    b, cq, _ = q3.shape
    qp = _pad_last(q3, n_pad)
    chan_pad = jnp.zeros((b, cq_pad - cq - 1, n_pad), q3.dtype)
    ones = jnp.ones((b, 1, n_pad), q3.dtype)
    return jnp.concatenate([qp, chan_pad, ones], axis=1).astype(jnp.bfloat16)


def attention_forward(x, params):
    B, C, W, H = x.shape
    C_half = C // 2
    N = W * H
    Cq = params["wq3"].shape[0]

    N_pad = _round_up(N, 128)
    Cq_pad = _round_up(Cq + 1, 8)          # +1 for the key-padding mask bias
    TQ = _pick_tq(N_pad, B)

    xf = x.reshape(B, C, N).astype(jnp.float32)
    x3 = xf[:, :C_half]
    x2 = xf[:, C_half:]

    # qi-invariant 1x1 convs done once in XLA (hoisted out of the kernel).
    conv = lambda w, bias, inp: jnp.einsum("oc,bcn->bon", w, inp) + bias[None, :, None]
    q3 = conv(params["wq3"], params["bq3"], x3)     # (B, Cq, N)  (== k3)
    k2 = conv(params["wq2"], params["bq2"], x2)     # (B, Cq, N)
    v3 = conv(params["wv3"], params["bv3"], x3)     # (B, C_half, N)

    keys_t = jnp.concatenate(
        [_make_keys_t(k2, N, N_pad, Cq_pad),
         _make_keys_t(q3, N, N_pad, Cq_pad)], axis=1)            # (B, 2*N_pad, Cq_pad)
    q_pad = _make_q(q3, N_pad, Cq_pad)                           # (B, Cq_pad, N_pad)
    v3_pad = _pad_last(v3, N_pad).astype(jnp.bfloat16)           # (B, C_half, N_pad)
    x3_pad = _pad_last(x3, N_pad)                                # (B, C_half, N_pad)

    gammas = jnp.asarray([params["gamma2"], params["gamma3"]], jnp.float32)

    grid = (B, N_pad // TQ)
    out = pl.pallas_call(
        attention_kernel,
        out_shape=jax.ShapeDtypeStruct((B, C_half, N_pad), jnp.float32),
        grid=grid,
        in_specs=[
            pl.BlockSpec(memory_space=pltpu.SMEM),                           # gammas (2,)
            pl.BlockSpec((1, Cq_pad, TQ), lambda b, qi: (b, 0, qi)),         # query tile
            pl.BlockSpec((1, 2 * N_pad, Cq_pad), lambda b, qi: (b, 0, 0)),   # fused keys^T
            pl.BlockSpec((1, C_half, N_pad), lambda b, qi: (b, 0, 0)),       # values
            pl.BlockSpec((1, C_half, TQ), lambda b, qi: (b, 0, qi)),         # residual slice
        ],
        out_specs=pl.BlockSpec((1, C_half, TQ), lambda b, qi: (b, 0, qi)),
        compiler_params=pltpu.CompilerParams(
            dimension_semantics=("parallel", "parallel"),
            vmem_limit_bytes=48 * 1024 * 1024),
    )(gammas, q_pad, keys_t, v3_pad, x3_pad)

    return out[:, :, :N].reshape(B, C_half, W, H)


def reference_forward(x, p):
    # Pure-JAX f32 reference mirroring the PyTorch forward (effective path).
    B, C, W, H = x.shape
    C_half = C // 2
    N = W * H
    x3 = x[:, :C_half].reshape(B, C_half, N)
    x2 = x[:, C_half:].reshape(B, C_half, N)
    conv1x1 = lambda w, b, inp: jnp.einsum("oc,bcn->bon", w, inp) + b[None, :, None]
    q3 = conv1x1(p["wq3"], p["bq3"], x3)
    k2 = conv1x1(p["wq2"], p["bq2"], x2)
    v3 = conv1x1(p["wv3"], p["bv3"], x3)
    a32 = jax.nn.softmax(jnp.einsum("bcn,bcm->bnm", q3, k2), axis=-1)
    a33 = jax.nn.softmax(jnp.einsum("bcn,bcm->bnm", q3, q3), axis=-1)
    out32 = jnp.einsum("bcm,bnm->bcn", v3, a32)
    out33 = jnp.einsum("bcm,bnm->bcn", v3, a33)
    out = p["gamma2"] * out32 + p["gamma3"] * out33 + x3
    return out.reshape(B, C_half, W, H)


if __name__ == "__main__":
    def make_params(key, C_half, Cq):
        ks = jax.random.split(key, 6)
        # PyTorch inits gamma2/gamma3 to 0, which would zero the attention
        # path; use nonzero values so the hot path is actually exercised.
        return {
            "wq3": 0.1 * jax.random.normal(ks[0], (Cq, C_half), jnp.float32),
            "bq3": 0.1 * jax.random.normal(ks[1], (Cq,), jnp.float32),
            "wq2": 0.1 * jax.random.normal(ks[2], (Cq, C_half), jnp.float32),
            "bq2": 0.1 * jax.random.normal(ks[3], (Cq,), jnp.float32),
            "wv3": 0.1 * jax.random.normal(ks[4], (C_half, C_half), jnp.float32),
            "bv3": 0.1 * jax.random.normal(ks[5], (C_half,), jnp.float32),
            "gamma2": 0.3,
            "gamma3": 0.7,
        }

    key = jax.random.PRNGKey(0)
    # (B, C, W, H): lane-dense primary case (N=256), a larger single-tile case
    # (N=512), and a non-multiple-of-128 case (N=64) exercising the pad/mask path.
    for (B, C, W, H) in [(2, 32, 16, 16), (2, 32, 16, 32), (2, 32, 8, 8)]:
        key, kx, kp = jax.random.split(key, 3)
        C_half = C // 2
        Cq = max(1, C_half // 8)      # ratio=8 as in Self_Attn
        x = jax.random.normal(kx, (B, C, W, H), dtype=jnp.float32)
        params = make_params(kp, C_half, Cq)

        out = jax.block_until_ready(attention_forward(x, params))
        ref = reference_forward(x, params)
        assert out.shape == (B, C_half, W, H)
        assert jnp.allclose(out, ref, atol=1e-2, rtol=1e-2), \
            f"mismatch vs reference for shape {(B, C, W, H)}"

    print("KERNEL_OK")
</pallas_src>

<mosaic_0001>
module attributes {stable_mosaic.version = 11 : i64} {
  func.func @attention_kernel(%arg0: i32, %arg1: i32, %arg2: memref<2xf32, #tpu.memory_space<smem>>, %arg3: memref<1x8x256xbf16, #tpu.memory_space<vmem>>, %arg4: memref<1x512x8xbf16, #tpu.memory_space<vmem>>, %arg5: memref<1x16x256xbf16, #tpu.memory_space<vmem>>, %arg6: memref<1x16x256xf32, #tpu.memory_space<vmem>>, %arg7: memref<1x16x256xf32, #tpu.memory_space<vmem>>) attributes {dimension_semantics = [#tpu.dimension_semantics<parallel>, #tpu.dimension_semantics<parallel>], iteration_bounds = array<i64: 2, 1>, scalar_prefetch = 0 : i64, scratch_operands = 0 : i64, tpu.core_type = #tpu.core_type<tc>, window_params = [{transform_indices = @transform_0, window_bounds = array<i64: 2>}, {transform_indices = @transform_1, window_bounds = array<i64: 1, 8, 256>}, {transform_indices = @transform_2, window_bounds = array<i64: 1, 512, 8>}, {transform_indices = @transform_3, window_bounds = array<i64: 1, 16, 256>}, {transform_indices = @transform_4, window_bounds = array<i64: 1, 16, 256>}, {transform_indices = @transform_5, window_bounds = array<i64: 1, 16, 256>}]} {
    %c0 = arith.constant 0 : index
    %c0_0 = arith.constant 0 : index
    %c0_1 = arith.constant 0 : index
    %0 = vector.load %arg3[%c0, %c0_0, %c0_1] : memref<1x8x256xbf16, #tpu.memory_space<vmem>>, vector<1x8x256xbf16>
    %1 = vector.shape_cast %0 : vector<1x8x256xbf16> to vector<8x256xbf16>
    %c0_2 = arith.constant 0 : index
    %c0_3 = arith.constant 0 : index
    %c0_4 = arith.constant 0 : index
    %2 = vector.load %arg4[%c0_2, %c0_3, %c0_4] : memref<1x512x8xbf16, #tpu.memory_space<vmem>>, vector<1x512x8xbf16>
    %3 = vector.shape_cast %2 : vector<1x512x8xbf16> to vector<512x8xbf16>
    %c0_5 = arith.constant 0 : index
    %c0_6 = arith.constant 0 : index
    %c0_7 = arith.constant 0 : index
    %4 = vector.load %arg5[%c0_5, %c0_6, %c0_7] : memref<1x16x256xbf16, #tpu.memory_space<vmem>>, vector<1x16x256xbf16>
    %5 = vector.shape_cast %4 : vector<1x16x256xbf16> to vector<16x256xbf16>
    %c0_8 = arith.constant 0 : index
    %c0_9 = arith.constant 0 : index
    %c0_10 = arith.constant 0 : index
    %6 = vector.load %arg6[%c0_8, %c0_9, %c0_10] : memref<1x16x256xf32, #tpu.memory_space<vmem>>, vector<1x16x256xf32>
    %7 = vector.shape_cast %6 : vector<1x16x256xf32> to vector<16x256xf32>
    %cst = arith.constant dense<0.000000e+00> : vector<512x256xf32>
    %8 = tpu.matmul %3, %1, %cst {dimension_numbers = #tpu.dot_dimension_numbers<[1], [0], [0], [1], [0, 0, 1, 1], [], []>} : vector<512x8xbf16>, vector<8x256xbf16>, vector<512x256xf32> -> vector<512x256xf32>
    %9 = vector.extract_strided_slice %8 {offsets = [0, 0], sizes = [256, 256], strides = [1, 1]} : vector<512x256xf32> to vector<256x256xf32>
    %10 = vector.extract_strided_slice %8 {offsets = [256, 0], sizes = [256, 256], strides = [1, 1]} : vector<512x256xf32> to vector<256x256xf32>
    %c0_11 = arith.constant 0 : index
    %11 = memref.load %arg2[%c0_11] : memref<2xf32, #tpu.memory_space<smem>>
    %cst_12 = arith.constant dense<0xFF800000> : vector<256xf32>
    %12 = vector.multi_reduction <maximumf>, %9, %cst_12 [0] : vector<256x256xf32> to vector<256xf32>
    %13 = vector.shape_cast %12 : vector<256xf32> to vector<1x256xf32>
    %14 = vector.broadcast %13 : vector<1x256xf32> to vector<256x256xf32>
    %15 = arith.subf %9, %14 : vector<256x256xf32>
    %16 = math.exp %15 : vector<256x256xf32>
    %cst_13 = arith.constant dense<0.000000e+00> : vector<256xf32>
    %17 = vector.multi_reduction <add>, %16, %cst_13 [0] : vector<256x256xf32> to vector<256xf32>
    %18 = vector.shape_cast %17 : vector<256xf32> to vector<1x256xf32>
    %19 = tpu.reciprocal %18 {approx = true} : vector<1x256xf32> -> vector<1x256xf32>
    %20 = vector.broadcast %11 : f32 to vector<1x256xf32>
    %21 = arith.mulf %20, %19 : vector<1x256xf32>
    %c1 = arith.constant 1 : index
    %22 = memref.load %arg2[%c1] : memref<2xf32, #tpu.memory_space<smem>>
    %cst_14 = arith.constant dense<0xFF800000> : vector<256xf32>
    %23 = vector.multi_reduction <maximumf>, %10, %cst_14 [0] : vector<256x256xf32> to vector<256xf32>
    %24 = vector.shape_cast %23 : vector<256xf32> to vector<1x256xf32>
    %25 = vector.broadcast %24 : vector<1x256xf32> to vector<256x256xf32>
    %26 = arith.subf %10, %25 : vector<256x256xf32>
    %27 = math.exp %26 : vector<256x256xf32>
    %cst_15 = arith.constant dense<0.000000e+00> : vector<256xf32>
    %28 = vector.multi_reduction <add>, %27, %cst_15 [0] : vector<256x256xf32> to vector<256xf32>
    %29 = vector.shape_cast %28 : vector<256xf32> to vector<1x256xf32>
    %30 = tpu.reciprocal %29 {approx = true} : vector<1x256xf32> -> vector<1x256xf32>
    %31 = vector.broadcast %22 : f32 to vector<1x256xf32>
    %32 = arith.mulf %31, %30 : vector<1x256xf32>
    %33 = vector.broadcast %21 : vector<1x256xf32> to vector<256x256xf32>
    %34 = arith.mulf %16, %33 : vector<256x256xf32>
    %35 = vector.broadcast %32 : vector<1x256xf32> to vector<256x256xf32>
    %36 = arith.mulf %27, %35 : vector<256x256xf32>
    %37 = arith.addf %34, %36 : vector<256x256xf32>
    %38 = arith.truncf %37 : vector<256x256xf32> to vector<256x256xbf16>
    %cst_16 = arith.constant dense<0.000000e+00> : vector<16x256xf32>
    %39 = tpu.matmul %5, %38, %cst_16 {dimension_numbers = #tpu.dot_dimension_numbers<[1], [0], [0], [1], [0, 0, 1, 1], [], []>} : vector<16x256xbf16>, vector<256x256xbf16>, vector<16x256xf32> -> vector<16x256xf32>
    %40 = arith.addf %39, %7 : vector<16x256xf32>
    %c0_17 = arith.constant 0 : index
    %c0_18 = arith.constant 0 : index
    %c0_19 = arith.constant 0 : index
    %41 = vector.load %arg7[%c0_17, %c0_18, %c0_19] : memref<1x16x256xf32, #tpu.memory_space<vmem>>, vector<1x16x256xf32>
    %42 = vector.shape_cast %41 : vector<1x16x256xf32> to vector<16x256xf32>
    %43 = vector.shape_cast %40 : vector<16x256xf32> to vector<1x16x256xf32>
    tpu.vector_store %arg7[%c0_17, %c0_18, %c0_19], %43 {strides = array<i32>} : memref<1x16x256xf32, #tpu.memory_space<vmem>>, vector<1x16x256xf32>,
    return
  }
  func.func @transform_0(%arg0: i32, %arg1: i32) -> i32 {
    %c0_i32 = arith.constant 0 : i32
    %c0_i32_0 = arith.constant 0 : i32
    return %c0_i32 : i32
  }
  func.func @transform_1(%arg0: i32, %arg1: i32) -> (i32, i32, i32) {
    %c0_i32 = arith.constant 0 : i32
    %c0_i32_0 = arith.constant 0 : i32
    return %arg0, %c0_i32, %arg1 : i32, i32, i32
  }
  func.func @transform_2(%arg0: i32, %arg1: i32) -> (i32, i32, i32) {
    %c0_i32 = arith.constant 0 : i32
    %c0_i32_0 = arith.constant 0 : i32
    %c0_i32_1 = arith.constant 0 : i32
    return %arg0, %c0_i32, %c0_i32_0 : i32, i32, i32
  }
  func.func @transform_3(%arg0: i32, %arg1: i32) -> (i32, i32, i32) {
    %c0_i32 = arith.constant 0 : i32
    %c0_i32_0 = arith.constant 0 : i32
    %c0_i32_1 = arith.constant 0 : i32
    return %arg0, %c0_i32, %c0_i32_0 : i32, i32, i32
  }
  func.func @transform_4(%arg0: i32, %arg1: i32) -> (i32, i32, i32) {
    %c0_i32 = arith.constant 0 : i32
    %c0_i32_0 = arith.constant 0 : i32
    return %arg0, %c0_i32, %arg1 : i32, i32, i32
  }
  func.func @transform_5(%arg0: i32, %arg1: i32) -> (i32, i32, i32) {
    %c0_i32 = arith.constant 0 : i32
    %c0_i32_0 = arith.constant 0 : i32
    return %arg0, %c0_i32, %arg1 : i32, i32, i32
  }
}

</mosaic_0001>

<llo_original>
// kernel: tpu_custom_call.1
$region0: #{tpu_custom_call.1}
  #allocation0 [shape = 'u32[]', space=smem, size = 0x4, offset = 0x4, fixed_abs, tag = 'smem constant byte address 0x4 - core index']
  #allocation1 [shape = 'u32[144,128]{1,0:T(1,128)}', space=vmem, size = 0x12000, scoped, tag = 'internal scratch']
  %s0 = inlined_call_operand.vmem [shape: f32[2], index: 0, kind: input, shape index: {}]
  %s1 = inlined_call_operand.vmem [shape: bf16[2,8,256], index: 1, kind: input, shape index: {}]
  %s2 = inlined_call_operand.vmem [shape: bf16[2,512,8], index: 2, kind: input, shape index: {}]
  %s3 = inlined_call_operand.vmem [shape: bf16[2,16,256], index: 3, kind: input, shape index: {}]
  %s4 = inlined_call_operand.vmem [shape: f32[2,16,256], index: 4, kind: input, shape index: {}]
  %s5 = inlined_call_operand.hbm [shape: f32[2,16,256], index: 5, kind: output, shape index: {}]
  %s6 = sld [smem:[#allocation0]]
  $region57: #{tpu_custom_call.1} parent=0
    _
  %s8 = ssub.s32 1, %s6
  %s9 = scalar_select 0, %s8, %s6
  $region1: #{tpu_custom_call.1} parent=0
    #allocation2 [shape = 'u8[512]{0}', space=smem, size = 0x200, scoped, tag = 'input window, operand 0, single buffered']
    #allocation3 [shape = 's32[2]{0}', space=sflag, size = 0x8, scoped, tag = 'scoped memory for tpu_custom_call.1']
    #allocation4 [shape = 's32[2]{0}', space=sflag, size = 0x8, scoped, tag = 'scoped memory for tpu_custom_call.1']
    #allocation5 [shape = 'u8[32768]{0}', space=vmem, size = 0x8000, scoped, tag = 'output window, operand 0']
    %10 = vsyncpa [#allocation4], 0
    %11 = vsyncpa [#allocation3], 0
    %s12 = scalar_lea.sflag [#allocation3], 1
    %13 = vsyncpa %s12, 0
    loop: start=0, step=1, limit=4
    $region2: #{tpu_custom_call.1} parent=1 // loop_pre_header
      _
    $region3: #{tpu_custom_call.1} parent=1 // loop_header
      %s15 = sphi 0, %s19
      %p16 = scmp.ge.s32.totalorder %s15, 4
      %s22 = sphi 0, %s34
      %s23 = sphi 0, %s30
      %s24 = sphi 0, %s22
      %s25 = sphi 0, %s23
      %s26 = sphi 0, %s24
      %s27 = sphi 0, %s25
      %s35 = sphi 0, %s35
      %s37 = sphi 0, %s35
      %s38 = sphi 0, %s37
      %s52 = sphi 0, %s38
      %s60 = sphi 0, %s62
      %s63 = sphi 0, %s60
      %s64 = sphi 0, %s63
      %s80 = sphi 0, %s64
      %s86 = sphi 0, %s88
      %s89 = sphi 0, %s86
      %s90 = sphi 0, %s89
      %s106 = sphi 0, %s90
      %s112 = sphi 0, %s114
      %s115 = sphi 0, %s112
      %s116 = sphi 0, %s115
      %s132 = sphi 0, %s116
      %s140 = sphi 0, %s142
      %s143 = sphi 0, %s140
      %s144 = sphi 0, %s143
      %s160 = sphi 0, %s144
      %s168 = sphi 0, %s170
      %s171 = sphi 0, %s168
      %s172 = sphi 0, %s171
      %s188 = sphi 0, %s172
    $region4: #{tpu_custom_call.1} parent=1 // loop_header_branch
      %18 = sbr.rel (%p16) target = $region8
    $region5: #{tpu_custom_call.1} parent=1 // loop_body
      %s20 = ssub.s32 %s15, 1
      %s21 = ssub.s32 %s15, 2
      %s28 = sadd.s32 1, %s23
      %p29 = scmp.ge.s32.totalorder %s28, 1
      %s30 = scalar_select %p29, 0, %s28
      %s31 = sadd.s32 1, %s22
      %s32 = scalar_select %p29, %s31, %s22
      %p33 = scmp.ge.s32.totalorder %s32, 2
      %s34 = scalar_select %p33, 0, %s32
      %s36 = sadd.s32 %s35, 1
      %p39 = scmp.eq.s32.totalorder %s15, 1
      %p40 = scmp.ne.s32.totalorder %s35, %s37
      %p41 = scmp.eq.s32.totalorder %s15, 0
      %p42 = por %p40, %p41
      %p43 = scmp.ne.s32.totalorder %s35, %s37
      %p44 = scmp.eq.s32.totalorder %s20, 1
      %p45 = por %p43, %p44
      %p46 = scmp.ne.s32.totalorder %s37, %s38
      %p47 = scmp.eq.s32.totalorder %s20, 0
      %p48 = por %p46, %p47
      %p49 = scmp.ne.s32.totalorder %s37, %s38
      %p50 = scmp.eq.s32.totalorder %s21, 1
      %p51 = por %p49, %p50
      %p53 = scmp.ne.s32.totalorder %s38, %s52
      %p54 = scmp.eq.s32.totalorder %s21, 0
      %p55 = por %p53, %p54
      %s56 = ssub.s32 %s22, %s34
      %s57 = ssub.s32 %s23, %s30
      %s58 = sor.u32 %s56, %s57
      %p59 = scmp.eq.s32.totalorder %s58, 0
      %s61 = sadd.s32 %s60, 1
      %s62 = scalar_select %p59, %s60, %s61
      %p65 = pneg %p59
      %p66 = scmp.eq.s32.totalorder %s15, 1
      %p67 = por %p65, %p66
      %p68 = scmp.ne.s32.totalorder %s60, %s63
      %p69 = scmp.eq.s32.totalorder %s15, 0
      %p70 = por %p68, %p69
      %p71 = scmp.ne.s32.totalorder %s60, %s63
      %p72 = scmp.eq.s32.totalorder %s20, 1
      %p73 = por %p71, %p72
      %p74 = scmp.ne.s32.totalorder %s63, %s64
      %p75 = scmp.eq.s32.totalorder %s20, 0
      %p76 = por %p74, %p75
      %p77 = scmp.ne.s32.totalorder %s63, %s64
      %p78 = scmp.eq.s32.totalorder %s21, 1
      %p79 = por %p77, %p78
      %p81 = scmp.ne.s32.totalorder %s64, %s80
      %p82 = scmp.eq.s32.totalorder %s21, 0
      %p83 = por %p81, %p82
      %s84 = ssub.s32 %s22, %s34
      %p85 = scmp.eq.s32.totalorder %s84, 0
      %s87 = sadd.s32 %s86, 1
      %s88 = scalar_select %p85, %s86, %s87
      %p91 = pneg %p85
      %p92 = scmp.eq.s32.totalorder %s15, 1
      %p93 = por %p91, %p92
      %p94 = scmp.ne.s32.totalorder %s86, %s89
      %p95 = scmp.eq.s32.totalorder %s15, 0
      %p96 = por %p94, %p95
      %p97 = scmp.ne.s32.totalorder %s86, %s89
      %p98 = scmp.eq.s32.totalorder %s20, 1
      %p99 = por %p97, %p98
      %p100 = scmp.ne.s32.totalorder %s89, %s90
      %p101 = scmp.eq.s32.totalorder %s20, 0
      %p102 = por %p100, %p101
      %p103 = scmp.ne.s32.totalorder %s89, %s90
      %p104 = scmp.eq.s32.totalorder %s21, 1
      %p105 = por %p103, %p104
      %p107 = scmp.ne.s32.totalorder %s90, %s106
      %p108 = scmp.eq.s32.totalorder %s21, 0
      %p109 = por %p107, %p108
      %s110 = ssub.s32 %s22, %s34
      %p111 = scmp.eq.s32.totalorder %s110, 0
      %s113 = sadd.s32 %s112, 1
      %s114 = scalar_select %p111, %s112, %s113
      %p117 = pneg %p111
      %p118 = scmp.eq.s32.totalorder %s15, 1
      %p119 = por %p117, %p118
      %p120 = scmp.ne.s32.totalorder %s112, %s115
      %p121 = scmp.eq.s32.totalorder %s15, 0
      %p122 = por %p120, %p121
      %p123 = scmp.ne.s32.totalorder %s112, %s115
      %p124 = scmp.eq.s32.totalorder %s20, 1
      %p125 = por %p123, %p124
      %p126 = scmp.ne.s32.totalorder %s115, %s116
      %p127 = scmp.eq.s32.totalorder %s20, 0
      %p128 = por %p126, %p127
      %p129 = scmp.ne.s32.totalorder %s115, %s116
      %p130 = scmp.eq.s32.totalorder %s21, 1
      %p131 = por %p129, %p130
      %p133 = scmp.ne.s32.totalorder %s116, %s132
      %p134 = scmp.eq.s32.totalorder %s21, 0
      %p135 = por %p133, %p134
      %s136 = ssub.s32 %s22, %s34
      %s137 = ssub.s32 %s23, %s30
      %s138 = sor.u32 %s136, %s137
      %p139 = scmp.eq.s32.totalorder %s138, 0
      %s141 = sadd.s32 %s140, 1
      %s142 = scalar_select %p139, %s140, %s141
      %p145 = pneg %p139
      %p146 = scmp.eq.s32.totalorder %s15, 1
      %p147 = por %p145, %p146
      %p148 = scmp.ne.s32.totalorder %s140, %s143
      %p149 = scmp.eq.s32.totalorder %s15, 0
      %p150 = por %p148, %p149
      %p151 = scmp.ne.s32.totalorder %s140, %s143
      %p152 = scmp.eq.s32.totalorder %s20, 1
      %p153 = por %p151, %p152
      %p154 = scmp.ne.s32.totalorder %s143, %s144
      %p155 = scmp.eq.s32.totalorder %s20, 0
      %p156 = por %p154, %p155
      %p157 = scmp.ne.s32.totalorder %s143, %s144
      %p158 = scmp.eq.s32.totalorder %s21, 1
      %p159 = por %p157, %p158
      %p161 = scmp.ne.s32.totalorder %s144, %s160
      %p162 = scmp.eq.s32.totalorder %s21, 0
      %p163 = por %p161, %p162
      %s164 = ssub.s32 %s22, %s34
      %s165 = ssub.s32 %s23, %s30
      %s166 = sor.u32 %s164, %s165
      %p167 = scmp.eq.s32.totalorder %s166, 0
      %s169 = sadd.s32 %s168, 1
      %s170 = scalar_select %p167, %s168, %s169
      %p173 = pneg %p167
      %p174 = scmp.eq.s32.totalorder %s15, 1
      %p175 = por %p173, %p174
      %p176 = scmp.ne.s32.totalorder %s168, %s171
      %p177 = scmp.eq.s32.totalorder %s15, 0
      %p178 = por %p176, %p177
      %p179 = scmp.ne.s32.totalorder %s168, %s171
      %p180 = scmp.eq.s32.totalorder %s20, 1
      %p181 = por %p179, %p180
      %p182 = scmp.ne.s32.totalorder %s171, %s172
      %p183 = scmp.eq.s32.totalorder %s20, 0
      %p184 = por %p182, %p183
      %p185 = scmp.ne.s32.totalorder %s171, %s172
      %p186 = scmp.eq.s32.totalorder %s21, 1
      %p187 = por %p185, %p186
      %p189 = scmp.ne.s32.totalorder %s172, %s188
      %p190 = scmp.eq.s32.totalorder %s21, 0
      %p191 = por %p189, %p190
      %p192 = scmp.le.s32.totalorder 1, %s15
      %p193 = scmp.lt.s32.totalorder %s15, 3
      %p194 = pnand %p192, %p193
      %p195 = pneg %p194
      // Predicated region
      $region9: #{tpu_custom_call.1} parent=5 // pred_check
        _
      $region10: #{tpu_custom_call.1} parent=5 // pred_check_branch
        %197 = sbr.rel (%p194) target = $region12
      $region11: #{tpu_custom_call.1} parent=5 // pred_region
        %s198 = ssub.s32 %s15, 1
        // Predicated region
        $region13: #{tpu_custom_call.1} parent=11 // pred_check
          %p199 = pneg %p48
        $region14: #{tpu_custom_call.1} parent=11 // pred_check_branch
          %201 = sbr.rel (%p199) target = $region16
        $region15: #{tpu_custom_call.1} parent=11 // pred_region
          %s203 = ssub.s32 16, 16
          %204 = vsyncadd [#allocation4], %s203
          %s206 = sshll.u32 %s0, 4
          %s207 = int_to_ptr.vmem [resolvable:$true] %s206
          %209 = dma.vmem_to_smem %s207, 16, [#allocation2], [#allocation4]
        $region16: #{tpu_custom_call.1} parent=11 // pred_fallthru
          _
      $region12: #{tpu_custom_call.1} parent=5 // pred_fallthru
        _
      %p210 = scmp.lt.s32.totalorder %s15, 2
      // Predicated region
      $region17: #{tpu_custom_call.1} parent=5 // pred_check
        %p211 = pneg %p210
      $region18: #{tpu_custom_call.1} parent=5 // pred_check_branch
        %213 = sbr.rel (%p211) target = $region20
      $region19: #{tpu_custom_call.1} parent=5 // pred_region
        // Predicated region
        $region21: #{tpu_custom_call.1} parent=19 // pred_check
          %p214 = pneg %p70
        $region22: #{tpu_custom_call.1} parent=19 // pred_check_branch
          %216 = sbr.rel (%p214) target = $region24
        $region23: #{tpu_custom_call.1} parent=19 // pred_region
          %s217 = smul.u32 2, %s23
          %p218 = scmp.lt.s32.totalorder %s22, 1
          %s219 = scalar_select %p218, %s22, 1
          %p220 = scmp.lt.s32.totalorder %s217, 1
          %s221 = scalar_select %p220, %s217, 1
          %s222 = smul.addr %s219, 2
          %s223 = sadd.s32 %s221, %s222
          %s224 = smul.addr %s223, 4
          %s225 = scalar_lea.vmem %s1, %s224
          %s226 = smul.u32 2, %s23
        $region24: #{tpu_custom_call.1} parent=19 // pred_fallthru
          _
        // Predicated region
        $region25: #{tpu_custom_call.1} parent=19 // pred_check
          %p227 = pneg %p96
        $region26: #{tpu_custom_call.1} parent=19 // pred_check_branch
          %229 = sbr.rel (%p227) target = $region28
        $region27: #{tpu_custom_call.1} parent=19 // pred_region
          %p230 = scmp.lt.s32.totalorder %s22, 1
          %s231 = scalar_select %p230, %s22, 1
          %s232 = smul.addr %s231, 64
          %s233 = smul.addr %s232, 4
          %s234 = scalar_lea.vmem %s2, %s233
        $region28: #{tpu_custom_call.1} parent=19 // pred_fallthru
          _
        // Predicated region
        $region29: #{tpu_custom_call.1} parent=19 // pred_check
          %p235 = pneg %p122
        $region30: #{tpu_custom_call.1} parent=19 // pred_check_branch
          %237 = sbr.rel (%p235) target = $region32
        $region31: #{tpu_custom_call.1} parent=19 // pred_region
          %p238 = scmp.lt.s32.totalorder %s22, 1
          %s239 = scalar_select %p238, %s22, 1
          %s240 = smul.addr %s239, 4
          %s241 = smul.addr %s240, 4
          %s242 = scalar_lea.vmem %s3, %s241
        $region32: #{tpu_custom_call.1} parent=19 // pred_fallthru
          _
        // Predicated region
        $region33: #{tpu_custom_call.1} parent=19 // pred_check
          %p243 = pneg %p150
        $region34: #{tpu_custom_call.1} parent=19 // pred_check_branch
          %245 = sbr.rel (%p243) target = $region36
        $region35: #{tpu_custom_call.1} parent=19 // pred_region
          %s246 = smul.u32 2, %s23
          %p247 = scmp.lt.s32.totalorder %s22, 1
          %s248 = scalar_select %p247, %s22, 1
          %p249 = scmp.lt.s32.totalorder %s246, 1
          %s250 = scalar_select %p249, %s246, 1
          %s251 = smul.addr %s248, 4
          %s252 = sadd.s32 %s250, %s251
          %s253 = smul.addr %s252, 8
          %s254 = scalar_lea.vmem %s4, %s253
          %s255 = smul.u32 2, %s23
        $region36: #{tpu_custom_call.1} parent=19 // pred_fallthru
          _
      $region20: #{tpu_custom_call.1} parent=5 // pred_fallthru
        _
      %p256 = scmp.le.s32.totalorder 1, %s15
      %p257 = scmp.lt.s32.totalorder %s15, 3
      %p258 = pnand %p256, %p257
      %p259 = pneg %p258
      // Predicated region
      $region37: #{tpu_custom_call.1} parent=5 // pred_check
        _
      $region38: #{tpu_custom_call.1} parent=5 // pred_check_branch
        %261 = sbr.rel (%p258) target = $region40
      $region39: #{tpu_custom_call.1} parent=5 // pred_region
        %s262 = ssub.s32 %s15, 1
        // Predicated region
        $region41: #{tpu_custom_call.1} parent=39 // pred_check
          %p263 = pneg %p48
        $region42: #{tpu_custom_call.1} parent=39 // pred_check_branch
          %265 = sbr.rel (%p263) target = $region44
        $region43: #{tpu_custom_call.1} parent=39 // pred_region
          %266 = dma.done [#allocation4], 16
        $region44: #{tpu_custom_call.1} parent=39 // pred_fallthru
          _
        %267 = sfence
        %p268 = pneg %p48
        %p269 = pneg %p45
        %s270 = smul.u32 2, %s25
        %p271 = scmp.lt.s32.totalorder %s24, 1
        %s272 = scalar_select %p271, %s24, 1
        %p273 = scmp.lt.s32.totalorder %s270, 1
        %s274 = scalar_select %p273, %s270, 1
        %s275 = smul.addr %s272, 2
        %s276 = sadd.s32 %s274, %s275
        %s277 = smul.addr %s276, 4
        %s278 = scalar_lea.vmem %s1, %s277
        %p279 = pneg %p76
        %p280 = pneg %p73
        %p281 = scmp.lt.s32.totalorder %s24, 1
        %s282 = scalar_select %p281, %s24, 1
        %s283 = smul.addr %s282, 64
        %s284 = smul.addr %s283, 4
        %s285 = scalar_lea.vmem %s2, %s284
        %p286 = pneg %p102
        %p287 = pneg %p99
        %p288 = scmp.lt.s32.totalorder %s24, 1
        %s289 = scalar_select %p288, %s24, 1
        %s290 = smul.addr %s289, 4
        %s291 = smul.addr %s290, 4
        %s292 = scalar_lea.vmem %s3, %s291
        %p293 = pneg %p128
        %p294 = pneg %p125
        %s295 = smul.u32 2, %s25
        %p296 = scmp.lt.s32.totalorder %s24, 1
        %s297 = scalar_select %p296, %s24, 1
        %p298 = scmp.lt.s32.totalorder %s295, 1
        %s299 = scalar_select %p298, %s295, 1
        %s300 = smul.addr %s297, 4
        %s301 = sadd.s32 %s299, %s300
        %s302 = smul.addr %s301, 8
        %s303 = scalar_lea.vmem %s4, %s302
        %p304 = pneg %p156
        %p305 = pneg %p153
        %p306 = pneg %p184
        %p307 = pneg %p181
        %s308 = sand.u32 %s171, 1
        %s309 = scalar_lea.sflag [#allocation3], %s308
        %s310 = sand.u32 %s171, 1
        %s311 = smul.addr %s310, 32
        %s312 = scalar_lea.vmem [#allocation5], %s311
        %s313 = smul.u32 2, %s25
        %p314 = scmp.lt.s32.totalorder %s24, 1
        %s315 = scalar_select %p314, %s24, 1
        %p316 = scmp.lt.s32.totalorder %s313, 1
        %s317 = scalar_select %p316, %s313, 1
        %s318 = smul.addr %s315, 2
        %s319 = sadd.s32 %s317, %s318
        %s320 = smul.addr %s319, 4
        %s321 = scalar_lea.vmem %s1, %s320
        %s322 = smul.u32 2, %s25
        %p323 = scmp.lt.s32.totalorder %s24, 1
        %s324 = scalar_select %p323, %s24, 1
        %s325 = smul.addr %s324, 64
        %s326 = smul.addr %s325, 4
        %s327 = scalar_lea.vmem %s2, %s326
        %p328 = scmp.lt.s32.totalorder %s24, 1
        %s329 = scalar_select %p328, %s24, 1
        %s330 = smul.addr %s329, 4
        %s331 = smul.addr %s330, 4
        %s332 = scalar_lea.vmem %s3, %s331
        %s333 = smul.u32 2, %s25
        %p334 = scmp.lt.s32.totalorder %s24, 1
        %s335 = scalar_select %p334, %s24, 1
        %p336 = scmp.lt.s32.totalorder %s333, 1
        %s337 = scalar_select %p336, %s333, 1
        %s338 = smul.addr %s335, 4
        %s339 = sadd.s32 %s337, %s338
        %s340 = smul.addr %s339, 8
        %s341 = scalar_lea.vmem %s4, %s340
        %s342 = smul.u32 2, %s25
        %s343 = smul.u32 2, %s25
        %v345 = vld [vmem:[%s321] sm:$0xff]
        %v346 = vld [vmem:[%s327] sm:$0xf]
        %v347 = vld [vmem:[%s327 + $0x4] sm:$0xf]
        %v348 = vld [vmem:[%s327 + $0x8] sm:$0xf]
        %v349 = vld [vmem:[%s327 + $0xc] sm:$0xf]
        %v350 = vld [vmem:[%s327 + $0x10] sm:$0xf]
        %v351 = vld [vmem:[%s327 + $0x14] sm:$0xf]
        %v352 = vld [vmem:[%s327 + $0x18] sm:$0xf]
        %v353 = vld [vmem:[%s327 + $0x1c] sm:$0xf]
        %v354 = vld [vmem:[%s327 + $0x20] sm:$0xf]
        %v355 = vld [vmem:[%s327 + $0x24] sm:$0xf]
        %v356 = vld [vmem:[%s327 + $0x28] sm:$0xf]
        %v357 = vld [vmem:[%s327 + $0x2c] sm:$0xf]
        %v358 = vld [vmem:[%s327 + $0x30] sm:$0xf]
        %v359 = vld [vmem:[%s327 + $0x34] sm:$0xf]
        %v360 = vld [vmem:[%s327 + $0x38] sm:$0xf]
        %v361 = vld [vmem:[%s327 + $0x3c] sm:$0xf]
        %v362 = vld [vmem:[%s327 + $0x40] sm:$0xf]
        %v363 = vld [vmem:[%s327 + $0x44] sm:$0xf]
        %v364 = vld [vmem:[%s327 + $0x48] sm:$0xf]
        %v365 = vld [vmem:[%s327 + $0x4c] sm:$0xf]
        %v366 = vld [vmem:[%s327 + $0x50] sm:$0xf]
        %v367 = vld [vmem:[%s327 + $0x54] sm:$0xf]
        %v368 = vld [vmem:[%s327 + $0x58] sm:$0xf]
        %v369 = vld [vmem:[%s327 + $0x5c] sm:$0xf]
        %v370 = vld [vmem:[%s327 + $0x60] sm:$0xf]
        %v371 = vld [vmem:[%s327 + $0x64] sm:$0xf]
        %v372 = vld [vmem:[%s327 + $0x68] sm:$0xf]
        %v373 = vld [vmem:[%s327 + $0x6c] sm:$0xf]
        %v374 = vld [vmem:[%s327 + $0x70] sm:$0xf]
        %v375 = vld [vmem:[%s327 + $0x74] sm:$0xf]
        %v376 = vld [vmem:[%s327 + $0x78] sm:$0xf]
        %v377 = vld [vmem:[%s327 + $0x7c] sm:$0xf]
        %v378 = vld [vmem:[%s327 + $0x80] sm:$0xf]
        %v379 = vld [vmem:[%s327 + $0x84] sm:$0xf]
        %v380 = vld [vmem:[%s327 + $0x88] sm:$0xf]
        %v381 = vld [vmem:[%s327 + $0x8c] sm:$0xf]
        %v382 = vld [vmem:[%s327 + $0x90] sm:$0xf]
        %v383 = vld [vmem:[%s327 + $0x94] sm:$0xf]
        %v384 = vld [vmem:[%s327 + $0x98] sm:$0xf]
        %v385 = vld [vmem:[%s327 + $0x9c] sm:$0xf]
        %v386 = vld [vmem:[%s327 + $0xa0] sm:$0xf]
        %v387 = vld [vmem:[%s327 + $0xa4] sm:$0xf]
        %v388 = vld [vmem:[%s327 + $0xa8] sm:$0xf]
        %v389 = vld [vmem:[%s327 + $0xac] sm:$0xf]
        %v390 = vld [vmem:[%s327 + $0xb0] sm:$0xf]
        %v391 = vld [vmem:[%s327 + $0xb4] sm:$0xf]
        %v392 = vld [vmem:[%s327 + $0xb8] sm:$0xf]
        %v393 = vld [vmem:[%s327 + $0xbc] sm:$0xf]
        %v394 = vld [vmem:[%s327 + $0xc0] sm:$0xf]
        %v395 = vld [vmem:[%s327 + $0xc4] sm:$0xf]
        %v396 = vld [vmem:[%s327 + $0xc8] sm:$0xf]
        %v397 = vld [vmem:[%s327 + $0xcc] sm:$0xf]
        %v398 = vld [vmem:[%s327 + $0xd0] sm:$0xf]
        %v399 = vld [vmem:[%s327 + $0xd4] sm:$0xf]
        %v400 = vld [vmem:[%s327 + $0xd8] sm:$0xf]
        %v401 = vld [vmem:[%s327 + $0xdc] sm:$0xf]
        %v402 = vld [vmem:[%s327 + $0xe0] sm:$0xf]
        %v403 = vld [vmem:[%s327 + $0xe4] sm:$0xf]
        %v404 = vld [vmem:[%s327 + $0xe8] sm:$0xf]
        %v405 = vld [vmem:[%s327 + $0xec] sm:$0xf]
        %v406 = vld [vmem:[%s327 + $0xf0] sm:$0xf]
        %v407 = vld [vmem:[%s327 + $0xf4] sm:$0xf]
        %v408 = vld [vmem:[%s327 + $0xf8] sm:$0xf]
        %v409 = vld [vmem:[%s327 + $0xfc] sm:$0xf]
        %v410 = vld [vmem:[%s332] sm:$0xff]
        %v411 = vld [vmem:[%s332 + $0x8] sm:$0xff]
        %v412 = vld [vmem:[%s341] sm:$0xff]
        %v413 = vld [vmem:[%s341 + $0x8] sm:$0xff]
        %v414 = vld [vmem:[%s341 + $0x10] sm:$0xff]
        %v415 = vld [vmem:[%s341 + $0x18] sm:$0xff]
        %v480 = vunpack.c.l.b16 %v346
        %v481 = vunpack.c.l.b16 %v347
        %v482 = vunpack.c.l.b16 %v348
        %v483 = vunpack.c.l.b16 %v349
        %v484 = vunpack.c.l.b16 %v350
        %v485 = vunpack.c.l.b16 %v351
        %v486 = vunpack.c.l.b16 %v352
        %v487 = vunpack.c.l.b16 %v353
        %v488 = vunpack.c.l.b16 %v354
        %v489 = vunpack.c.l.b16 %v355
        %v490 = vunpack.c.l.b16 %v356
        %v491 = vunpack.c.l.b16 %v357
        %v492 = vunpack.c.l.b16 %v358
        %v493 = vunpack.c.l.b16 %v359
        %v494 = vunpack.c.l.b16 %v360
        %v495 = vunpack.c.l.b16 %v361
        %v496 = vunpack.c.l.b16 %v362
        %v497 = vunpack.c.l.b16 %v363
        %v498 = vunpack.c.l.b16 %v364
        %v499 = vunpack.c.l.b16 %v365
        %v500 = vunpack.c.l.b16 %v366
        %v501 = vunpack.c.l.b16 %v367
        %v502 = vunpack.c.l.b16 %v368
        %v503 = vunpack.c.l.b16 %v369
        %v504 = vunpack.c.l.b16 %v370
        %v505 = vunpack.c.l.b16 %v371
        %v506 = vunpack.c.l.b16 %v372
        %v507 = vunpack.c.l.b16 %v373
        %v508 = vunpack.c.l.b16 %v374
        %v509 = vunpack.c.l.b16 %v375
        %v510 = vunpack.c.l.b16 %v376
        %v511 = vunpack.c.l.b16 %v377
        %v512 = vunpack.c.l.b16 %v378
        %v513 = vunpack.c.l.b16 %v379
        %v514 = vunpack.c.l.b16 %v380
        %v515 = vunpack.c.l.b16 %v381
        %v516 = vunpack.c.l.b16 %v382
        %v517 = vunpack.c.l.b16 %v383
        %v518 = vunpack.c.l.b16 %v384
        %v519 = vunpack.c.l.b16 %v385
        %v520 = vunpack.c.l.b16 %v386
        %v521 = vunpack.c.l.b16 %v387
        %v522 = vunpack.c.l.b16 %v388
        %v523 = vunpack.c.l.b16 %v389
        %v524 = vunpack.c.l.b16 %v390
        %v525 = vunpack.c.l.b16 %v391
        %v526 = vunpack.c.l.b16 %v392
        %v527 = vunpack.c.l.b16 %v393
        %v528 = vunpack.c.l.b16 %v394
        %v529 = vunpack.c.l.b16 %v395
        %v530 = vunpack.c.l.b16 %v396
        %v531 = vunpack.c.l.b16 %v397
        %v532 = vunpack.c.l.b16 %v398
        %v533 = vunpack.c.l.b16 %v399
        %v534 = vunpack.c.l.b16 %v400
        %v535 = vunpack.c.l.b16 %v401
        %v536 = vunpack.c.l.b16 %v402
        %v537 = vunpack.c.l.b16 %v403
        %v538 = vunpack.c.l.b16 %v404
        %v539 = vunpack.c.l.b16 %v405
        %v540 = vunpack.c.l.b16 %v406
        %v541 = vunpack.c.l.b16 %v407
        %v542 = vunpack.c.l.b16 %v408
        %v543 = vunpack.c.l.b16 %v409
        %v544 = vpack.c.b16 %v481, %v480
        %v545 = vpack.c.b16 %v483, %v482
        %v546 = vpack.c.b16 %v485, %v484
        %v547 = vpack.c.b16 %v487, %v486
        %v548 = vpack.c.b16 %v489, %v488
        %v549 = vpack.c.b16 %v491, %v490
        %v550 = vpack.c.b16 %v493, %v492
        %v551 = vpack.c.b16 %v495, %v494
        %v552 = vpack.c.b16 %v497, %v496
        %v553 = vpack.c.b16 %v499, %v498
        %v554 = vpack.c.b16 %v501, %v500
        %v555 = vpack.c.b16 %v503, %v502
        %v556 = vpack.c.b16 %v505, %v504
        %v557 = vpack.c.b16 %v507, %v506
        %v558 = vpack.c.b16 %v509, %v508
        %v559 = vpack.c.b16 %v511, %v510
        %v560 = vpack.c.b16 %v513, %v512
        %v561 = vpack.c.b16 %v515, %v514
        %v562 = vpack.c.b16 %v517, %v516
        %v563 = vpack.c.b16 %v519, %v518
        %v564 = vpack.c.b16 %v521, %v520
        %v565 = vpack.c.b16 %v523, %v522
        %v566 = vpack.c.b16 %v525, %v524
        %v567 = vpack.c.b16 %v527, %v526
        %v568 = vpack.c.b16 %v529, %v528
        %v569 = vpack.c.b16 %v531, %v530
        %v570 = vpack.c.b16 %v533, %v532
        %v571 = vpack.c.b16 %v535, %v534
        %v572 = vpack.c.b16 %v537, %v536
        %v573 = vpack.c.b16 %v539, %v538
        %v574 = vpack.c.b16 %v541, %v540
        %v575 = vpack.c.b16 %v543, %v542
        %v577 = vunpack.c.l.b16 %v345
        %v578 = vunpack.c.h.b16 %v345
        %v579 = vpack.c.b16 %v577, %v577
        %v580 = vpack.c.b16 %v578, %v578
        %vm581 = vcmask 64512
        %v583 = vsel %vm581, %v544, 0
        %v586 = vsel %vm581, %v545, 0
        %v589 = vsel %vm581, %v546, 0
        %v592 = vsel %vm581, %v547, 0
        %v595 = vsel %vm581, %v548, 0
        %v598 = vsel %vm581, %v549, 0
        %v601 = vsel %vm581, %v550, 0
        %v604 = vsel %vm581, %v551, 0
        %v607 = vsel %vm581, %v552, 0
        %v610 = vsel %vm581, %v553, 0
        %v613 = vsel %vm581, %v554, 0
        %v616 = vsel %vm581, %v555, 0
        %v619 = vsel %vm581, %v556, 0
        %v622 = vsel %vm581, %v557, 0
        %v625 = vsel %vm581, %v558, 0
        %v628 = vsel %vm581, %v559, 0
        %v631 = vsel %vm581, %v560, 0
        %v634 = vsel %vm581, %v561, 0
        %v637 = vsel %vm581, %v562, 0
        %v640 = vsel %vm581, %v563, 0
        %v643 = vsel %vm581, %v564, 0
        %v646 = vsel %vm581, %v565, 0
        %v649 = vsel %vm581, %v566, 0
        %v652 = vsel %vm581, %v567, 0
        %v655 = vsel %vm581, %v568, 0
        %v658 = vsel %vm581, %v569, 0
        %v661 = vsel %vm581, %v570, 0
        %v664 = vsel %vm581, %v571, 0
        %v667 = vsel %vm581, %v572, 0
        %v670 = vsel %vm581, %v573, 0
        %v673 = vsel %vm581, %v574, 0
        %v676 = vsel %vm581, %v575, 0
        %vm678 = vcmask 1043456
        %v680 = vsel %vm678, %v579, 0
        %v683 = vsel %vm678, %v580, 0
        %685 = vmatprep.subr.bf16.mxu0 %v683
        %686 = vmatpush1.bf16.msra.mxu0 %v680
        %687 = vmatprep.subr.bf16.mxu0 0
        %688 = vmatpush1.bf16.msra.mxu0 0
        %689 = vmatprep.subr.bf16.mxu0 0
        %690 = vmatpush1.bf16.msra.mxu0 0
        %691 = vmatprep.subr.bf16.mxu0 0
        %692 = vmatpush1.bf16.msra.mxu0 0
        %693 = vmatprep.subr.bf16.mxu0 0
        %694 = vmatpush1.bf16.msra.mxu0 0
        %695 = vmatprep.subr.bf16.mxu0 0
        %696 = vmatpush1.bf16.msra.mxu0 0
        %697 = vmatprep.subr.bf16.mxu0 0
        %698 = vmatpush1.bf16.msra.mxu0 0
        %699 = vmatprep.subr.bf16.mxu0 0
        %700 = vmatpush1.bf16.msra.mxu0 0
        %701 = vmatprep.subr.bf16.mxu0 0
        %702 = vmatpush1.bf16.msra.mxu0 0
        %703 = vmatprep.subr.bf16.mxu0 0
        %704 = vmatpush1.bf16.msra.mxu0 0
        %705 = vmatprep.subr.bf16.mxu0 0
        %706 = vmatpush1.bf16.msra.mxu0 0
        %707 = vmatprep.subr.bf16.mxu0 0
        %708 = vmatpush1.bf16.msra.mxu0 0
        %709 = vmatprep.subr.bf16.mxu0 0
        %710 = vmatpush1.bf16.msra.mxu0 0
        %711 = vmatprep.subr.bf16.mxu0 0
        %712 = vmatpush1.bf16.msra.mxu0 0
        %713 = vmatprep.subr.bf16.mxu0 0
        %714 = vmatpush1.bf16.msra.mxu0 0
        %715 = vmatprep.subr.bf16.mxu0 0
        %716 = vmatpush1.bf16.msra.mxu0 0
        %717 = vmatprep.mubr.bf16.mxu0 0
        %718 = vmatmul.mubr.bf16.gmra.mrb[0].mxu0 %v583
        %v719 = vpop.f32.mrb[0].mxu0
        %v720 = vadd.f32 0.0, %v719
        %v721 = vpop.f32.mrb[0].mxu0
        %v722 = vadd.f32 0.0, %v721
        %v723 = vpop.f32.mrb[0].mxu0
        %v724 = vadd.f32 0.0, %v723
        %v725 = vpop.f32.mrb[0].mxu0
        %v726 = vadd.f32 0.0, %v725
        %727 = vmatprep.mubr.bf16.mxu0 0
        %728 = vmatmul.mubr.bf16.gmra.mrb[0].mxu0 %v586
        %v729 = vpop.f32.mrb[0].mxu0
        %v730 = vadd.f32 0.0, %v729
        %v731 = vpop.f32.mrb[0].mxu0
        %v732 = vadd.f32 0.0, %v731
        %v733 = vpop.f32.mrb[0].mxu0
        %v734 = vadd.f32 0.0, %v733
        %v735 = vpop.f32.mrb[0].mxu0
        %v736 = vadd.f32 0.0, %v735
        %737 = vmatprep.mubr.bf16.mxu0 0
        %738 = vmatmul.mubr.bf16.gmra.mrb[0].mxu0 %v589
        %v739 = vpop.f32.mrb[0].mxu0
        %v740 = vadd.f32 0.0, %v739
        %v741 = vpop.f32.mrb[0].mxu0
        %v742 = vadd.f32 0.0, %v741
        %v743 = vpop.f32.mrb[0].mxu0
        %v744 = vadd.f32 0.0, %v743
        %v745 = vpop.f32.mrb[0].mxu0
        %v746 = vadd.f32 0.0, %v745
        %747 = vmatprep.mubr.bf16.mxu0 0
        %748 = vmatmul.mubr.bf16.gmra.mrb[0].mxu0 %v592
        %v749 = vpop.f32.mrb[0].mxu0
        %v750 = vadd.f32 0.0, %v749
        %v751 = vpop.f32.mrb[0].mxu0
        %v752 = vadd.f32 0.0, %v751
        %v753 = vpop.f32.mrb[0].mxu0
        %v754 = vadd.f32 0.0, %v753
        %v755 = vpop.f32.mrb[0].mxu0
        %v756 = vadd.f32 0.0, %v755
        %757 = vmatprep.mubr.bf16.mxu0 0
        %758 = vmatmul.mubr.bf16.gmra.mrb[0].mxu0 %v595
        %v759 = vpop.f32.mrb[0].mxu0
        %v760 = vadd.f32 0.0, %v759
        %v761 = vpop.f32.mrb[0].mxu0
        %v762 = vadd.f32 0.0, %v761
        %v763 = vpop.f32.mrb[0].mxu0
        %v764 = vadd.f32 0.0, %v763
        %v765 = vpop.f32.mrb[0].mxu0
        %v766 = vadd.f32 0.0, %v765
        %767 = vmatprep.mubr.bf16.mxu0 0
        %768 = vmatmul.mubr.bf16.gmra.mrb[0].mxu0 %v598
        %v769 = vpop.f32.mrb[0].mxu0
        %v770 = vadd.f32 0.0, %v769
        %v771 = vpop.f32.mrb[0].mxu0
        %v772 = vadd.f32 0.0, %v771
        %v773 = vpop.f32.mrb[0].mxu0
        %v774 = vadd.f32 0.0, %v773
        %v775 = vpop.f32.mrb[0].mxu0
        %v776 = vadd.f32 0.0, %v775
        %777 = vmatprep.mubr.bf16.mxu0 0
        %778 = vmatmul.mubr.bf16.gmra.mrb[0].mxu0 %v601
        %v779 = vpop.f32.mrb[0].mxu0
        %v780 = vadd.f32 0.0, %v779
        %v781 = vpop.f32.mrb[0].mxu0
        %v782 = vadd.f32 0.0, %v781
        %v783 = vpop.f32.mrb[0].mxu0
        %v784 = vadd.f32 0.0, %v783
        %v785 = vpop.f32.mrb[0].mxu0
        %v786 = vadd.f32 0.0, %v785
        %787 = vmatprep.mubr.bf16.mxu0 0
        %788 = vmatmul.mubr.bf16.gmra.mrb[0].mxu0 %v604
        %v789 = vpop.f32.mrb[0].mxu0
        %v790 = vadd.f32 0.0, %v789
        %v791 = vpop.f32.mrb[0].mxu0
        %v792 = vadd.f32 0.0, %v791
        %v793 = vpop.f32.mrb[0].mxu0
        %v794 = vadd.f32 0.0, %v793
        %v795 = vpop.f32.mrb[0].mxu0
        %v796 = vadd.f32 0.0, %v795
        %797 = vmatprep.mubr.bf16.mxu0 0
        %798 = vmatmul.mubr.bf16.gmra.mrb[0].mxu0 %v607
        %v799 = vpop.f32.mrb[0].mxu0
        %v800 = vadd.f32 0.0, %v799
        %v801 = vpop.f32.mrb[0].mxu0
        %v802 = vadd.f32 0.0, %v801
        %v803 = vpop.f32.mrb[0].mxu0
        %v804 = vadd.f32 0.0, %v803
        %v805 = vpop.f32.mrb[0].mxu0
        %v806 = vadd.f32 0.0, %v805
        %807 = vmatprep.mubr.bf16.mxu0 0
        %808 = vmatmul.mubr.bf16.gmra.mrb[0].mxu0 %v610
        %v809 = vpop.f32.mrb[0].mxu0
        %v810 = vadd.f32 0.0, %v809
        %v811 = vpop.f32.mrb[0].mxu0
        %v812 = vadd.f32 0.0, %v811
        %v813 = vpop.f32.mrb[0].mxu0
        %v814 = vadd.f32 0.0, %v813
        %v815 = vpop.f32.mrb[0].mxu0
        %v816 = vadd.f32 0.0, %v815
        %817 = vmatprep.mubr.bf16.mxu0 0
        %818 = vmatmul.mubr.bf16.gmra.mrb[0].mxu0 %v613
        %v819 = vpop.f32.mrb[0].mxu0
        %v820 = vadd.f32 0.0, %v819
        %v821 = vpop.f32.mrb[0].mxu0
        %v822 = vadd.f32 0.0, %v821
        %v823 = vpop.f32.mrb[0].mxu0
        %v824 = vadd.f32 0.0, %v823
        %v825 = vpop.f32.mrb[0].mxu0
        %v826 = vadd.f32 0.0, %v825
        %827 = vmatprep.mubr.bf16.mxu0 0
        %828 = vmatmul.mubr.bf16.gmra.mrb[0].mxu0 %v616
        %v829 = vpop.f32.mrb[0].mxu0
        %v830 = vadd.f32 0.0, %v829
        %v831 = vpop.f32.mrb[0].mxu0
        %v832 = vadd.f32 0.0, %v831
        %v833 = vpop.f32.mrb[0].mxu0
        %v834 = vadd.f32 0.0, %v833
        %v835 = vpop.f32.mrb[0].mxu0
        %v836 = vadd.f32 0.0, %v835
        %837 = vmatprep.mubr.bf16.mxu0 0
        %838 = vmatmul.mubr.bf16.gmra.mrb[0].mxu0 %v619
        %v839 = vpop.f32.mrb[0].mxu0
        %v840 = vadd.f32 0.0, %v839
        %v841 = vpop.f32.mrb[0].mxu0
        %v842 = vadd.f32 0.0, %v841
        %v843 = vpop.f32.mrb[0].mxu0
        %v844 = vadd.f32 0.0, %v843
        %v845 = vpop.f32.mrb[0].mxu0
        %v846 = vadd.f32 0.0, %v845
        %847 = vmatprep.mubr.bf16.mxu0 0
        %848 = vmatmul.mubr.bf16.gmra.mrb[0].mxu0 %v622
        %v849 = vpop.f32.mrb[0].mxu0
        %v850 = vadd.f32 0.0, %v849
        %v851 = vpop.f32.mrb[0].mxu0
        %v852 = vadd.f32 0.0, %v851
        %v853 = vpop.f32.mrb[0].mxu0
        %v854 = vadd.f32 0.0, %v853
        %v855 = vpop.f32.mrb[0].mxu0
        %v856 = vadd.f32 0.0, %v855
        %857 = vmatprep.mubr.bf16.mxu0 0
        %858 = vmatmul.mubr.bf16.gmra.mrb[0].mxu0 %v625
        %v859 = vpop.f32.mrb[0].mxu0
        %v860 = vadd.f32 0.0, %v859
        %v861 = vpop.f32.mrb[0].mxu0
        %v862 = vadd.f32 0.0, %v861
        %v863 = vpop.f32.mrb[0].mxu0
        %v864 = vadd.f32 0.0, %v863
        %v865 = vpop.f32.mrb[0].mxu0
        %v866 = vadd.f32 0.0, %v865
        %867 = vmatprep.mubr.bf16.mxu0 0
        %868 = vmatmul.mubr.bf16.gmra.mrb[0].mxu0 %v628
        %v869 = vpop.f32.mrb[0].mxu0
        %v870 = vadd.f32 0.0, %v869
        %v871 = vpop.f32.mrb[0].mxu0
        %v872 = vadd.f32 0.0, %v871
        %v873 = vpop.f32.mrb[0].mxu0
        %v874 = vadd.f32 0.0, %v873
        %v875 = vpop.f32.mrb[0].mxu0
        %v876 = vadd.f32 0.0, %v875
        %877 = vmatprep.mubr.bf16.mxu0 0
        %878 = vmatmul.mubr.bf16.gmra.mrb[0].mxu0 %v631
        %v879 = vpop.f32.mrb[0].mxu0
        %v880 = vadd.f32 0.0, %v879
        %v881 = vpop.f32.mrb[0].mxu0
        %v882 = vadd.f32 0.0, %v881
        %v883 = vpop.f32.mrb[0].mxu0
        %v884 = vadd.f32 0.0, %v883
        %v885 = vpop.f32.mrb[0].mxu0
        %v886 = vadd.f32 0.0, %v885
        %887 = vmatprep.mubr.bf16.mxu0 0
        %888 = vmatmul.mubr.bf16.gmra.mrb[0].mxu0 %v634
        %v889 = vpop.f32.mrb[0].mxu0
        %v890 = vadd.f32 0.0, %v889
        %v891 = vpop.f32.mrb[0].mxu0
        %v892 = vadd.f32 0.0, %v891
        %v893 = vpop.f32.mrb[0].mxu0
        %v894 = vadd.f32 0.0, %v893
        %v895 = vpop.f32.mrb[0].mxu0
        %v896 = vadd.f32 0.0, %v895
        %897 = vmatprep.mubr.bf16.mxu0 0
        %898 = vmatmul.mubr.bf16.gmra.mrb[0].mxu0 %v637
        %v899 = vpop.f32.mrb[0].mxu0
        %v900 = vadd.f32 0.0, %v899
        %v901 = vpop.f32.mrb[0].mxu0
        %v902 = vadd.f32 0.0, %v901
        %v903 = vpop.f32.mrb[0].mxu0
        %v904 = vadd.f32 0.0, %v903
        %v905 = vpop.f32.mrb[0].mxu0
        %v906 = vadd.f32 0.0, %v905
        %907 = vmatprep.mubr.bf16.mxu0 0
        %908 = vmatmul.mubr.bf16.gmra.mrb[0].mxu0 %v640
        %v909 = vpop.f32.mrb[0].mxu0
        %v910 = vadd.f32 0.0, %v909
        %v911 = vpop.f32.mrb[0].mxu0
        %v912 = vadd.f32 0.0, %v911
        %v913 = vpop.f32.mrb[0].mxu0
        %v914 = vadd.f32 0.0, %v913
        %v915 = vpop.f32.mrb[0].mxu0
        %v916 = vadd.f32 0.0, %v915
        %917 = vmatprep.mubr.bf16.mxu0 0
        %918 = vmatmul.mubr.bf16.gmra.mrb[0].mxu0 %v643
        %v919 = vpop.f32.mrb[0].mxu0
        %v920 = vadd.f32 0.0, %v919
        %v921 = vpop.f32.mrb[0].mxu0
        %v922 = vadd.f32 0.0, %v921
        %v923 = vpop.f32.mrb[0].mxu0
        %v924 = vadd.f32 0.0, %v923
        %v925 = vpop.f32.mrb[0].mxu0
        %v926 = vadd.f32 0.0, %v925
        %927 = vmatprep.mubr.bf16.mxu0 0
        %928 = vmatmul.mubr.bf16.gmra.mrb[0].mxu0 %v646
        %v929 = vpop.f32.mrb[0].mxu0
        %v930 = vadd.f32 0.0, %v929
        %v931 = vpop.f32.mrb[0].mxu0
        %v932 = vadd.f32 0.0, %v931
        %v933 = vpop.f32.mrb[0].mxu0
        %v934 = vadd.f32 0.0, %v933
        %v935 = vpop.f32.mrb[0].mxu0
        %v936 = vadd.f32 0.0, %v935
        %937 = vmatprep.mubr.bf16.mxu0 0
        %938 = vmatmul.mubr.bf16.gmra.mrb[0].mxu0 %v649
        %v939 = vpop.f32.mrb[0].mxu0
        %v940 = vadd.f32 0.0, %v939
        %v941 = vpop.f32.mrb[0].mxu0
        %v942 = vadd.f32 0.0, %v941
        %v943 = vpop.f32.mrb[0].mxu0
        %v944 = vadd.f32 0.0, %v943
        %v945 = vpop.f32.mrb[0].mxu0
        %v946 = vadd.f32 0.0, %v945
        %947 = vmatprep.mubr.bf16.mxu0 0
        %948 = vmatmul.mubr.bf16.gmra.mrb[0].mxu0 %v652
        %v949 = vpop.f32.mrb[0].mxu0
        %v950 = vadd.f32 0.0, %v949
        %v951 = vpop.f32.mrb[0].mxu0
        %v952 = vadd.f32 0.0, %v951
        %v953 = vpop.f32.mrb[0].mxu0
        %v954 = vadd.f32 0.0, %v953
        %v955 = vpop.f32.mrb[0].mxu0
        %v956 = vadd.f32 0.0, %v955
        %957 = vmatprep.mubr.bf16.mxu0 0
        %958 = vmatmul.mubr.bf16.gmra.mrb[0].mxu0 %v655
        %v959 = vpop.f32.mrb[0].mxu0
        %v960 = vadd.f32 0.0, %v959
        %v961 = vpop.f32.mrb[0].mxu0
        %v962 = vadd.f32 0.0, %v961
        %v963 = vpop.f32.mrb[0].mxu0
        %v964 = vadd.f32 0.0, %v963
        %v965 = vpop.f32.mrb[0].mxu0
        %v966 = vadd.f32 0.0, %v965
        %967 = vmatprep.mubr.bf16.mxu0 0
        %968 = vmatmul.mubr.bf16.gmra.mrb[0].mxu0 %v658
        %v969 = vpop.f32.mrb[0].mxu0
        %v970 = vadd.f32 0.0, %v969
        %v971 = vpop.f32.mrb[0].mxu0
        %v972 = vadd.f32 0.0, %v971
        %v973 = vpop.f32.mrb[0].mxu0
        %v974 = vadd.f32 0.0, %v973
        %v975 = vpop.f32.mrb[0].mxu0
        %v976 = vadd.f32 0.0, %v975
        %977 = vmatprep.mubr.bf16.mxu0 0
        %978 = vmatmul.mubr.bf16.gmra.mrb[0].mxu0 %v661
        %v979 = vpop.f32.mrb[0].mxu0
        %v980 = vadd.f32 0.0, %v979
        %v981 = vpop.f32.mrb[0].mxu0
        %v982 = vadd.f32 0.0, %v981
        %v983 = vpop.f32.mrb[0].mxu0
        %v984 = vadd.f32 0.0, %v983
        %v985 = vpop.f32.mrb[0].mxu0
        %v986 = vadd.f32 0.0, %v985
        %987 = vmatprep.mubr.bf16.mxu0 0
        %988 = vmatmul.mubr.bf16.gmra.mrb[0].mxu0 %v664
        %v989 = vpop.f32.mrb[0].mxu0
        %v990 = vadd.f32 0.0, %v989
        %v991 = vpop.f32.mrb[0].mxu0
        %v992 = vadd.f32 0.0, %v991
        %v993 = vpop.f32.mrb[0].mxu0
        %v994 = vadd.f32 0.0, %v993
        %v995 = vpop.f32.mrb[0].mxu0
        %v996 = vadd.f32 0.0, %v995
        %997 = vmatprep.mubr.bf16.mxu0 0
        %998 = vmatmul.mubr.bf16.gmra.mrb[0].mxu0 %v667
        %v999 = vpop.f32.mrb[0].mxu0
        %v1000 = vadd.f32 0.0, %v999
        %v1001 = vpop.f32.mrb[0].mxu0
        %v1002 = vadd.f32 0.0, %v1001
        %v1003 = vpop.f32.mrb[0].mxu0
        %v1004 = vadd.f32 0.0, %v1003
        %v1005 = vpop.f32.mrb[0].mxu0
        %v1006 = vadd.f32 0.0, %v1005
        %1007 = vmatprep.mubr.bf16.mxu0 0
        %1008 = vmatmul.mubr.bf16.gmra.mrb[0].mxu0 %v670
        %v1009 = vpop.f32.mrb[0].mxu0
        %v1010 = vadd.f32 0.0, %v1009
        %v1011 = vpop.f32.mrb[0].mxu0
        %v1012 = vadd.f32 0.0, %v1011
        %v1013 = vpop.f32.mrb[0].mxu0
        %v1014 = vadd.f32 0.0, %v1013
        %v1015 = vpop.f32.mrb[0].mxu0
        %v1016 = vadd.f32 0.0, %v1015
        %1017 = vmatprep.mubr.bf16.mxu0 0
        %1018 = vmatmul.mubr.bf16.gmra.mrb[0].mxu0 %v673
        %v1019 = vpop.f32.mrb[0].mxu0
        %v1020 = vadd.f32 0.0, %v1019
        %v1021 = vpop.f32.mrb[0].mxu0
        %v1022 = vadd.f32 0.0, %v1021
        %v1023 = vpop.f32.mrb[0].mxu0
        %v1024 = vadd.f32 0.0, %v1023
        %v1025 = vpop.f32.mrb[0].mxu0
        %v1026 = vadd.f32 0.0, %v1025
        %1027 = vmatprep.mubr.bf16.mxu0 0
        %1028 = vmatmul.mubr.bf16.gmra.mrb[0].mxu0 %v676
        %v1029 = vpop.f32.mrb[0].mxu0
        %v1030 = vadd.f32 0.0, %v1029
        %v1031 = vpop.f32.mrb[0].mxu0
        %v1032 = vadd.f32 0.0, %v1031
        %v1033 = vpop.f32.mrb[0].mxu0
        %v1034 = vadd.f32 0.0, %v1033
        %v1035 = vpop.f32.mrb[0].mxu0
        %v1036 = vadd.f32 0.0, %v1035
        %1037 = vdwg.mxu0
        %s1038 = sld [smem:[#allocation2]]
        %v1039 = vmax.f32 %v720, %v730
        %v1040 = vmax.f32 %v724, %v734
        %v1041 = vmax.f32 %v1039, %v740
        %v1042 = vmax.f32 %v1040, %v744
        %v1043 = vmax.f32 %v1041, %v750
        %v1044 = vmax.f32 %v1042, %v754
        %v1045 = vmax.f32 %v1043, %v760
        %v1046 = vmax.f32 %v1044, %v764
        %v1047 = vmax.f32 %v1045, %v770
        %v1048 = vmax.f32 %v1046, %v774
        %v1049 = vmax.f32 %v1047, %v780
        %v1050 = vmax.f32 %v1048, %v784
        %v1051 = vmax.f32 %v1049, %v790
        %v1052 = vmax.f32 %v1050, %v794
        %v1053 = vmax.f32 %v1051, %v800
        %v1054 = vmax.f32 %v1052, %v804
        %v1055 = vmax.f32 %v1053, %v810
        %v1056 = vmax.f32 %v1054, %v814
        %v1057 = vmax.f32 %v1055, %v820
        %v1058 = vmax.f32 %v1056, %v824
        %v1059 = vmax.f32 %v1057, %v830
        %v1060 = vmax.f32 %v1058, %v834
        %v1061 = vmax.f32 %v1059, %v840
        %v1062 = vmax.f32 %v1060, %v844
        %v1063 = vmax.f32 %v1061, %v850
        %v1064 = vmax.f32 %v1062, %v854
        %v1065 = vmax.f32 %v1063, %v860
        %v1066 = vmax.f32 %v1064, %v864
        %v1067 = vmax.f32 %v1065, %v870
        %v1068 = vmax.f32 %v1066, %v874
        %v1069 = vmax.f32 %v1067, %v1068
        %v1070 = vrot.slane %v1069, 4
        %v1071 = vmax.f32 %v1069, %v1070
        %v1072 = vrot.slane %v1071, 2
        %v1073 = vmax.f32 %v1071, %v1072
        %v1074 = vrot.slane %v1073, 1
        %v1075 = vmax.f32 %v1073, %v1074
        %v1076 = vmax.f32 %v722, %v732
        %v1077 = vmax.f32 %v726, %v736
        %v1078 = vmax.f32 %v1076, %v742
        %v1079 = vmax.f32 %v1077, %v746
        %v1080 = vmax.f32 %v1078, %v752
        %v1081 = vmax.f32 %v1079, %v756
        %v1082 = vmax.f32 %v1080, %v762
        %v1083 = vmax.f32 %v1081, %v766
        %v1084 = vmax.f32 %v1082, %v772
        %v1085 = vmax.f32 %v1083, %v776
        %v1086 = vmax.f32 %v1084, %v782
        %v1087 = vmax.f32 %v1085, %v786
        %v1088 = vmax.f32 %v1086, %v792
        %v1089 = vmax.f32 %v1087, %v796
        %v1090 = vmax.f32 %v1088, %v802
        %v1091 = vmax.f32 %v1089, %v806
        %v1092 = vmax.f32 %v1090, %v812
        %v1093 = vmax.f32 %v1091, %v816
        %v1094 = vmax.f32 %v1092, %v822
        %v1095 = vmax.f32 %v1093, %v826
        %v1096 = vmax.f32 %v1094, %v832
        %v1097 = vmax.f32 %v1095, %v836
        %v1098 = vmax.f32 %v1096, %v842
        %v1099 = vmax.f32 %v1097, %v846
        %v1100 = vmax.f32 %v1098, %v852
        %v1101 = vmax.f32 %v1099, %v856
        %v1102 = vmax.f32 %v1100, %v862
        %v1103 = vmax.f32 %v1101, %v866
        %v1104 = vmax.f32 %v1102, %v872
        %v1105 = vmax.f32 %v1103, %v876
        %v1106 = vmax.f32 %v1104, %v1105
        %v1107 = vrot.slane %v1106, 4
        %v1108 = vmax.f32 %v1106, %v1107
        %v1109 = vrot.slane %v1108, 2
        %v1110 = vmax.f32 %v1108, %v1109
        %v1111 = vrot.slane %v1110, 1
        %v1112 = vmax.f32 %v1110, %v1111
        %v1113 = vsub.f32 %v720, %v1075
        %v1114 = vsub.f32 %v722, %v1112
        %v1115 = vsub.f32 %v724, %v1075
        %v1116 = vsub.f32 %v726, %v1112
        %v1117 = vsub.f32 %v730, %v1075
        %v1118 = vsub.f32 %v732, %v1112
        %v1119 = vsub.f32 %v734, %v1075
        %v1120 = vsub.f32 %v736, %v1112
        %v1121 = vsub.f32 %v740, %v1075
        %v1122 = vsub.f32 %v742, %v1112
        %v1123 = vsub.f32 %v744, %v1075
        %v1124 = vsub.f32 %v746, %v1112
        %v1125 = vsub.f32 %v750, %v1075
        %v1126 = vsub.f32 %v752, %v1112
        %v1127 = vsub.f32 %v754, %v1075
        %v1128 = vsub.f32 %v756, %v1112
        %v1129 = vsub.f32 %v760, %v1075
        %v1130 = vsub.f32 %v762, %v1112
        %v1131 = vsub.f32 %v764, %v1075
        %v1132 = vsub.f32 %v766, %v1112
        %v1133 = vsub.f32 %v770, %v1075
        %v1134 = vsub.f32 %v772, %v1112
        %v1135 = vsub.f32 %v774, %v1075
        %v1136 = vsub.f32 %v776, %v1112
        %v1137 = vsub.f32 %v780, %v1075
        %v1138 = vsub.f32 %v782, %v1112
        %v1139 = vsub.f32 %v784, %v1075
        %v1140 = vsub.f32 %v786, %v1112
        %v1141 = vsub.f32 %v790, %v1075
        %v1142 = vsub.f32 %v792, %v1112
        %v1143 = vsub.f32 %v794, %v1075
        %v1144 = vsub.f32 %v796, %v1112
        %v1145 = vsub.f32 %v800, %v1075
        %v1146 = vsub.f32 %v802, %v1112
        %v1147 = vsub.f32 %v804, %v1075
        %v1148 = vsub.f32 %v806, %v1112
        %v1149 = vsub.f32 %v810, %v1075
        %v1150 = vsub.f32 %v812, %v1112
        %v1151 = vsub.f32 %v814, %v1075
        %v1152 = vsub.f32 %v816, %v1112
        %v1153 = vsub.f32 %v820, %v1075
        %v1154 = vsub.f32 %v822, %v1112
        %v1155 = vsub.f32 %v824, %v1075
        %v1156 = vsub.f32 %v826, %v1112
        %v1157 = vsub.f32 %v830, %v1075
        %v1158 = vsub.f32 %v832, %v1112
        %v1159 = vsub.f32 %v834, %v1075
        %v1160 = vsub.f32 %v836, %v1112
        %v1161 = vsub.f32 %v840, %v1075
        %v1162 = vsub.f32 %v842, %v1112
        %v1163 = vsub.f32 %v844, %v1075
        %v1164 = vsub.f32 %v846, %v1112
        %v1165 = vsub.f32 %v850, %v1075
        %v1166 = vsub.f32 %v852, %v1112
        %v1167 = vsub.f32 %v854, %v1075
        %v1168 = vsub.f32 %v856, %v1112
        %v1169 = vsub.f32 %v860, %v1075
        %v1170 = vsub.f32 %v862, %v1112
        %v1171 = vsub.f32 %v864, %v1075
        %v1172 = vsub.f32 %v866, %v1112
        %v1173 = vsub.f32 %v870, %v1075
        %v1174 = vsub.f32 %v872, %v1112
        %v1175 = vsub.f32 %v874, %v1075
        %v1176 = vsub.f32 %v876, %v1112
        %v1177 = vmul.f32 %v1113, 1.442695
        %v1178 = vpow.pop %v1177
        %v1179 = vmul.f32 %v1114, 1.442695
        %v1180 = vpow.pop %v1179
        %v1181 = vmul.f32 %v1115, 1.442695
        %v1182 = vpow.pop %v1181
        %v1183 = vmul.f32 %v1116, 1.442695
        %v1184 = vpow.pop %v1183
        %v1185 = vmul.f32 %v1117, 1.442695
        %v1186 = vpow.pop %v1185
        %v1187 = vmul.f32 %v1118, 1.442695
        %v1188 = vpow.pop %v1187
        %v1189 = vmul.f32 %v1119, 1.442695
        %v1190 = vpow.pop %v1189
        %v1191 = vmul.f32 %v1120, 1.442695
        %v1192 = vpow.pop %v1191
        %v1193 = vmul.f32 %v1121, 1.442695
        %v1194 = vpow.pop %v1193
        %v1195 = vmul.f32 %v1122, 1.442695
        %v1196 = vpow.pop %v1195
        %v1197 = vmul.f32 %v1123, 1.442695
        %v1198 = vpow.pop %v1197
        %v1199 = vmul.f32 %v1124, 1.442695
        %v1200 = vpow.pop %v1199
        %v1201 = vmul.f32 %v1125, 1.442695
        %v1202 = vpow.pop %v1201
        %v1203 = vmul.f32 %v1126, 1.442695
        %v1204 = vpow.pop %v1203
        %v1205 = vmul.f32 %v1127, 1.442695
        %v1206 = vpow.pop %v1205
        %v1207 = vmul.f32 %v1128, 1.442695
        %v1208 = vpow.pop %v1207
        %v1209 = vmul.f32 %v1129, 1.442695
        %v1210 = vpow.pop %v1209
        %v1211 = vmul.f32 %v1130, 1.442695
        %v1212 = vpow.pop %v1211
        %v1213 = vmul.f32 %v1131, 1.442695
        %v1214 = vpow.pop %v1213
        %v1215 = vmul.f32 %v1132, 1.442695
        %v1216 = vpow.pop %v1215
        %v1217 = vmul.f32 %v1133, 1.442695
        %v1218 = vpow.pop %v1217
        %v1219 = vmul.f32 %v1134, 1.442695
        %v1220 = vpow.pop %v1219
        %v1221 = vmul.f32 %v1135, 1.442695
        %v1222 = vpow.pop %v1221
        %v1223 = vmul.f32 %v1136, 1.442695
        %v1224 = vpow.pop %v1223
        %v1225 = vmul.f32 %v1137, 1.442695
        %v1226 = vpow.pop %v1225
        %v1227 = vmul.f32 %v1138, 1.442695
        %v1228 = vpow.pop %v1227
        %v1229 = vmul.f32 %v1139, 1.442695
        %v1230 = vpow.pop %v1229
        %v1231 = vmul.f32 %v1140, 1.442695
        %v1232 = vpow.pop %v1231
        %v1233 = vmul.f32 %v1141, 1.442695
        %v1234 = vpow.pop %v1233
        %v1235 = vmul.f32 %v1142, 1.442695
        %v1236 = vpow.pop %v1235
        %v1237 = vmul.f32 %v1143, 1.442695
        %v1238 = vpow.pop %v1237
        %v1239 = vmul.f32 %v1144, 1.442695
        %v1240 = vpow.pop %v1239
        %v1241 = vmul.f32 %v1145, 1.442695
        %v1242 = vpow.pop %v1241
        %v1243 = vmul.f32 %v1146, 1.442695
        %v1244 = vpow.pop %v1243
        %v1245 = vmul.f32 %v1147, 1.442695
        %v1246 = vpow.pop %v1245
        %v1247 = vmul.f32 %v1148, 1.442695
        %v1248 = vpow.pop %v1247
        %v1249 = vmul.f32 %v1149, 1.442695
        %v1250 = vpow.pop %v1249
        %v1251 = vmul.f32 %v1150, 1.442695
        %v1252 = vpow.pop %v1251
        %v1253 = vmul.f32 %v1151, 1.442695
        %v1254 = vpow.pop %v1253
        %v1255 = vmul.f32 %v1152, 1.442695
        %v1256 = vpow.pop %v1255
        %v1257 = vmul.f32 %v1153, 1.442695
        %v1258 = vpow.pop %v1257
        %v1259 = vmul.f32 %v1154, 1.442695
        %v1260 = vpow.pop %v1259
        %v1261 = vmul.f32 %v1155, 1.442695
        %v1262 = vpow.pop %v1261
        %v1263 = vmul.f32 %v1156, 1.442695
        %v1264 = vpow.pop %v1263
        %v1265 = vmul.f32 %v1157, 1.442695
        %v1266 = vpow.pop %v1265
        %v1267 = vmul.f32 %v1158, 1.442695
        %v1268 = vpow.pop %v1267
        %v1269 = vmul.f32 %v1159, 1.442695
        %v1270 = vpow.pop %v1269
        %v1271 = vmul.f32 %v1160, 1.442695
        %v1272 = vpow.pop %v1271
        %v1273 = vmul.f32 %v1161, 1.442695
        %v1274 = vpow.pop %v1273
        %v1275 = vmul.f32 %v1162, 1.442695
        %v1276 = vpow.pop %v1275
        %v1277 = vmul.f32 %v1163, 1.442695
        %v1278 = vpow.pop %v1277
        %v1279 = vmul.f32 %v1164, 1.442695
        %v1280 = vpow.pop %v1279
        %v1281 = vmul.f32 %v1165, 1.442695
        %v1282 = vpow.pop %v1281
        %v1283 = vmul.f32 %v1166, 1.442695
        %v1284 = vpow.pop %v1283
        %v1285 = vmul.f32 %v1167, 1.442695
        %v1286 = vpow.pop %v1285
        %v1287 = vmul.f32 %v1168, 1.442695
        %v1288 = vpow.pop %v1287
        %v1289 = vmul.f32 %v1169, 1.442695
        %v1290 = vpow.pop %v1289
        %v1291 = vmul.f32 %v1170, 1.442695
        %v1292 = vpow.pop %v1291
        %v1293 = vmul.f32 %v1171, 1.442695
        %v1294 = vpow.pop %v1293
        %v1295 = vmul.f32 %v1172, 1.442695
        %v1296 = vpow.pop %v1295
        %v1297 = vmul.f32 %v1173, 1.442695
        %v1298 = vpow.pop %v1297
        %v1299 = vmul.f32 %v1174, 1.442695
        %v1300 = vpow.pop %v1299
        %v1301 = vmul.f32 %v1175, 1.442695
        %v1302 = vpow.pop %v1301
        %v1303 = vmul.f32 %v1176, 1.442695
        %v1304 = vpow.pop %v1303
        %v1305 = vadd.f32 %v1178, %v1182
        %v1306 = vadd.f32 %v1305, %v1186
        %v1307 = vadd.f32 %v1306, %v1190
        %v1308 = vadd.f32 %v1307, %v1194
        %v1309 = vadd.f32 %v1308, %v1198
        %v1310 = vadd.f32 %v1309, %v1202
        %v1311 = vadd.f32 %v1310, %v1206
        %v1312 = vadd.f32 %v1311, %v1210
        %v1313 = vadd.f32 %v1312, %v1214
        %v1314 = vadd.f32 %v1313, %v1218
        %v1315 = vadd.f32 %v1314, %v1222
        %v1316 = vadd.f32 %v1315, %v1226
        %v1317 = vadd.f32 %v1316, %v1230
        %v1318 = vadd.f32 %v1317, %v1234
        %v1319 = vadd.f32 %v1318, %v1238
        %v1320 = vadd.f32 %v1319, %v1242
        %v1321 = vadd.f32 %v1320, %v1246
        %v1322 = vadd.f32 %v1321, %v1250
        %v1323 = vadd.f32 %v1322, %v1254
        %v1324 = vadd.f32 %v1323, %v1258
        %v1325 = vadd.f32 %v1324, %v1262
        %v1326 = vadd.f32 %v1325, %v1266
        %v1327 = vadd.f32 %v1326, %v1270
        %v1328 = vadd.f32 %v1327, %v1274
        %v1329 = vadd.f32 %v1328, %v1278
        %v1330 = vadd.f32 %v1329, %v1282
        %v1331 = vadd.f32 %v1330, %v1286
        %v1332 = vadd.f32 %v1331, %v1290
        %v1333 = vadd.f32 %v1332, %v1294
        %v1334 = vadd.f32 %v1333, %v1298
        %v1335 = vadd.f32 %v1334, %v1302
        %v1336 = vrot.slane %v1335, 4
        %v1337 = vadd.f32 %v1335, %v1336
        %v1338 = vrot.slane %v1337, 2
        %v1339 = vadd.f32 %v1337, %v1338
        %v1340 = vrot.slane %v1339, 1
        %v1341 = vadd.f32 %v1339, %v1340
        %v1342 = vadd.f32 %v1180, %v1184
        %v1343 = vadd.f32 %v1342, %v1188
        %v1344 = vadd.f32 %v1343, %v1192
        %v1345 = vadd.f32 %v1344, %v1196
        %v1346 = vadd.f32 %v1345, %v1200
        %v1347 = vadd.f32 %v1346, %v1204
        %v1348 = vadd.f32 %v1347, %v1208
        %v1349 = vadd.f32 %v1348, %v1212
        %v1350 = vadd.f32 %v1349, %v1216
        %v1351 = vadd.f32 %v1350, %v1220
        %v1352 = vadd.f32 %v1351, %v1224
        %v1353 = vadd.f32 %v1352, %v1228
        %v1354 = vadd.f32 %v1353, %v1232
        %v1355 = vadd.f32 %v1354, %v1236
        %v1356 = vadd.f32 %v1355, %v1240
        %v1357 = vadd.f32 %v1356, %v1244
        %v1358 = vadd.f32 %v1357, %v1248
        %v1359 = vadd.f32 %v1358, %v1252
        %v1360 = vadd.f32 %v1359, %v1256
        %v1361 = vadd.f32 %v1360, %v1260
        %v1362 = vadd.f32 %v1361, %v1264
        %v1363 = vadd.f32 %v1362, %v1268
        %v1364 = vadd.f32 %v1363, %v1272
        %v1365 = vadd.f32 %v1364, %v1276
        %v1366 = vadd.f32 %v1365, %v1280
        %v1367 = vadd.f32 %v1366, %v1284
        %v1368 = vadd.f32 %v1367, %v1288
        %v1369 = vadd.f32 %v1368, %v1292
        %v1370 = vadd.f32 %v1369, %v1296
        %v1371 = vadd.f32 %v1370, %v1300
        %v1372 = vadd.f32 %v1371, %v1304
        %v1373 = vrot.slane %v1372, 4
        %v1374 = vadd.f32 %v1372, %v1373
        %v1375 = vrot.slane %v1374, 2
        %v1376 = vadd.f32 %v1374, %v1375
        %v1377 = vrot.slane %v1376, 1
        %v1378 = vadd.f32 %v1376, %v1377
        %v1379 = vrcp.pop %v1341
        %v1380 = vrcp.pop %v1378
        %v1381 = vstv %s1038
        %v1382 = vmul.f32 %v1381, %v1379
        %v1383 = vmul.f32 %v1381, %v1380
        %s1384 = sld [smem:[#allocation2 + $0x1]]
        %v1385 = vmax.f32 %v880, %v890
        %v1386 = vmax.f32 %v884, %v894
        %v1387 = vmax.f32 %v1385, %v900
        %v1388 = vmax.f32 %v1386, %v904
        %v1389 = vmax.f32 %v1387, %v910
        %v1390 = vmax.f32 %v1388, %v914
        %v1391 = vmax.f32 %v1389, %v920
        %v1392 = vmax.f32 %v1390, %v924
        %v1393 = vmax.f32 %v1391, %v930
        %v1394 = vmax.f32 %v1392, %v934
        %v1395 = vmax.f32 %v1393, %v940
        %v1396 = vmax.f32 %v1394, %v944
        %v1397 = vmax.f32 %v1395, %v950
        %v1398 = vmax.f32 %v1396, %v954
        %v1399 = vmax.f32 %v1397, %v960
        %v1400 = vmax.f32 %v1398, %v964
        %v1401 = vmax.f32 %v1399, %v970
        %v1402 = vmax.f32 %v1400, %v974
        %v1403 = vmax.f32 %v1401, %v980
        %v1404 = vmax.f32 %v1402, %v984
        %v1405 = vmax.f32 %v1403, %v990
        %v1406 = vmax.f32 %v1404, %v994
        %v1407 = vmax.f32 %v1405, %v1000
        %v1408 = vmax.f32 %v1406, %v1004
        %v1409 = vmax.f32 %v1407, %v1010
        %v1410 = vmax.f32 %v1408, %v1014
        %v1411 = vmax.f32 %v1409, %v1020
        %v1412 = vmax.f32 %v1410, %v1024
        %v1413 = vmax.f32 %v1411, %v1030
        %v1414 = vmax.f32 %v1412, %v1034
        %v1415 = vmax.f32 %v1413, %v1414
        %v1416 = vrot.slane %v1415, 4
        %v1417 = vmax.f32 %v1415, %v1416
        %v1418 = vrot.slane %v1417, 2
        %v1419 = vmax.f32 %v1417, %v1418
        %v1420 = vrot.slane %v1419, 1
        %v1421 = vmax.f32 %v1419, %v1420
        %v1422 = vmax.f32 %v882, %v892
        %v1423 = vmax.f32 %v886, %v896
        %v1424 = vmax.f32 %v1422, %v902
        %v1425 = vmax.f32 %v1423, %v906
        %v1426 = vmax.f32 %v1424, %v912
        %v1427 = vmax.f32 %v1425, %v916
        %v1428 = vmax.f32 %v1426, %v922
        %v1429 = vmax.f32 %v1427, %v926
        %v1430 = vmax.f32 %v1428, %v932
        %v1431 = vmax.f32 %v1429, %v936
        %v1432 = vmax.f32 %v1430, %v942
        %v1433 = vmax.f32 %v1431, %v946
        %v1434 = vmax.f32 %v1432, %v952
        %v1435 = vmax.f32 %v1433, %v956
        %v1436 = vmax.f32 %v1434, %v962
        %v1437 = vmax.f32 %v1435, %v966
        %v1438 = vmax.f32 %v1436, %v972
        %v1439 = vmax.f32 %v1437, %v976
        %v1440 = vmax.f32 %v1438, %v982
        %v1441 = vmax.f32 %v1439, %v986
        %v1442 = vmax.f32 %v1440, %v992
        %v1443 = vmax.f32 %v1441, %v996
        %v1444 = vmax.f32 %v1442, %v1002
        %v1445 = vmax.f32 %v1443, %v1006
        %v1446 = vmax.f32 %v1444, %v1012
        %v1447 = vmax.f32 %v1445, %v1016
        %v1448 = vmax.f32 %v1446, %v1022
        %v1449 = vmax.f32 %v1447, %v1026
        %v1450 = vmax.f32 %v1448, %v1032
        %v1451 = vmax.f32 %v1449, %v1036
        %v1452 = vmax.f32 %v1450, %v1451
        %v1453 = vrot.slane %v1452, 4
        %v1454 = vmax.f32 %v1452, %v1453
        %v1455 = vrot.slane %v1454, 2
        %v1456 = vmax.f32 %v1454, %v1455
        %v1457 = vrot.slane %v1456, 1
        %v1458 = vmax.f32 %v1456, %v1457
        %v1459 = vsub.f32 %v880, %v1421
        %v1460 = vsub.f32 %v882, %v1458
        %v1461 = vsub.f32 %v884, %v1421
        %v1462 = vsub.f32 %v886, %v1458
        %v1463 = vsub.f32 %v890, %v1421
        %v1464 = vsub.f32 %v892, %v1458
        %v1465 = vsub.f32 %v894, %v1421
        %v1466 = vsub.f32 %v896, %v1458
        %v1467 = vsub.f32 %v900, %v1421
        %v1468 = vsub.f32 %v902, %v1458
        %v1469 = vsub.f32 %v904, %v1421
        %v1470 = vsub.f32 %v906, %v1458
        %v1471 = vsub.f32 %v910, %v1421
        %v1472 = vsub.f32 %v912, %v1458
        %v1473 = vsub.f32 %v914, %v1421
        %v1474 = vsub.f32 %v916, %v1458
        %v1475 = vsub.f32 %v920, %v1421
        %v1476 = vsub.f32 %v922, %v1458
        %v1477 = vsub.f32 %v924, %v1421
        %v1478 = vsub.f32 %v926, %v1458
        %v1479 = vsub.f32 %v930, %v1421
        %v1480 = vsub.f32 %v932, %v1458
        %v1481 = vsub.f32 %v934, %v1421
        %v1482 = vsub.f32 %v936, %v1458
        %v1483 = vsub.f32 %v940, %v1421
        %v1484 = vsub.f32 %v942, %v1458
        %v1485 = vsub.f32 %v944, %v1421
        %v1486 = vsub.f32 %v946, %v1458
        %v1487 = vsub.f32 %v950, %v1421
        %v1488 = vsub.f32 %v952, %v1458
        %v1489 = vsub.f32 %v954, %v1421
        %v1490 = vsub.f32 %v956, %v1458
        %v1491 = vsub.f32 %v960, %v1421
        %v1492 = vsub.f32 %v962, %v1458
        %v1493 = vsub.f32 %v964, %v1421
        %v1494 = vsub.f32 %v966, %v1458
        %v1495 = vsub.f32 %v970, %v1421
        %v1496 = vsub.f32 %v972, %v1458
        %v1497 = vsub.f32 %v974, %v1421
        %v1498 = vsub.f32 %v976, %v1458
        %v1499 = vsub.f32 %v980, %v1421
        %v1500 = vsub.f32 %v982, %v1458
        %v1501 = vsub.f32 %v984, %v1421
        %v1502 = vsub.f32 %v986, %v1458
        %v1503 = vsub.f32 %v990, %v1421
        %v1504 = vsub.f32 %v992, %v1458
        %v1505 = vsub.f32 %v994, %v1421
        %v1506 = vsub.f32 %v996, %v1458
        %v1507 = vsub.f32 %v1000, %v1421
        %v1508 = vsub.f32 %v1002, %v1458
        %v1509 = vsub.f32 %v1004, %v1421
        %v1510 = vsub.f32 %v1006, %v1458
        %v1511 = vsub.f32 %v1010, %v1421
        %v1512 = vsub.f32 %v1012, %v1458
        %v1513 = vsub.f32 %v1014, %v1421
        %v1514 = vsub.f32 %v1016, %v1458
        %v1515 = vsub.f32 %v1020, %v1421
        %v1516 = vsub.f32 %v1022, %v1458
        %v1517 = vsub.f32 %v1024, %v1421
        %v1518 = vsub.f32 %v1026, %v1458
        %v1519 = vsub.f32 %v1030, %v1421
        %v1520 = vsub.f32 %v1032, %v1458
        %v1521 = vsub.f32 %v1034, %v1421
        %v1522 = vsub.f32 %v1036, %v1458
        %v1523 = vmul.f32 %v1459, 1.442695
        %v1524 = vpow.pop %v1523
        %v1525 = vmul.f32 %v1460, 1.442695
        %v1526 = vpow.pop %v1525
        %v1527 = vmul.f32 %v1461, 1.442695
        %v1528 = vpow.pop %v1527
        %v1529 = vmul.f32 %v1462, 1.442695
        %v1530 = vpow.pop %v1529
        %v1531 = vmul.f32 %v1463, 1.442695
        %v1532 = vpow.pop %v1531
        %v1533 = vmul.f32 %v1464, 1.442695
        %v1534 = vpow.pop %v1533
        %v1535 = vmul.f32 %v1465, 1.442695
        %v1536 = vpow.pop %v1535
        %v1537 = vmul.f32 %v1466, 1.442695
        %v1538 = vpow.pop %v1537
        %v1539 = vmul.f32 %v1467, 1.442695
        %v1540 = vpow.pop %v1539
        %v1541 = vmul.f32 %v1468, 1.442695
        %v1542 = vpow.pop %v1541
        %v1543 = vmul.f32 %v1469, 1.442695
        %v1544 = vpow.pop %v1543
        %v1545 = vmul.f32 %v1470, 1.442695
        %v1546 = vpow.pop %v1545
        %v1547 = vmul.f32 %v1471, 1.442695
        %v1548 = vpow.pop %v1547
        %v1549 = vmul.f32 %v1472, 1.442695
        %v1550 = vpow.pop %v1549
        %v1551 = vmul.f32 %v1473, 1.442695
        %v1552 = vpow.pop %v1551
        %v1553 = vmul.f32 %v1474, 1.442695
        %v1554 = vpow.pop %v1553
        %v1555 = vmul.f32 %v1475, 1.442695
        %v1556 = vpow.pop %v1555
        %v1557 = vmul.f32 %v1476, 1.442695
        %v1558 = vpow.pop %v1557
        %v1559 = vmul.f32 %v1477, 1.442695
        %v1560 = vpow.pop %v1559
        %v1561 = vmul.f32 %v1478, 1.442695
        %v1562 = vpow.pop %v1561
        %v1563 = vmul.f32 %v1479, 1.442695
        %v1564 = vpow.pop %v1563
        %v1565 = vmul.f32 %v1480, 1.442695
        %v1566 = vpow.pop %v1565
        %v1567 = vmul.f32 %v1481, 1.442695
        %v1568 = vpow.pop %v1567
        %v1569 = vmul.f32 %v1482, 1.442695
        %v1570 = vpow.pop %v1569
        %v1571 = vmul.f32 %v1483, 1.442695
        %v1572 = vpow.pop %v1571
        %v1573 = vmul.f32 %v1484, 1.442695
        %v1574 = vpow.pop %v1573
        %v1575 = vmul.f32 %v1485, 1.442695
        %v1576 = vpow.pop %v1575
        %v1577 = vmul.f32 %v1486, 1.442695
        %v1578 = vpow.pop %v1577
        %v1579 = vmul.f32 %v1487, 1.442695
        %v1580 = vpow.pop %v1579
        %v1581 = vmul.f32 %v1488, 1.442695
        %v1582 = vpow.pop %v1581
        %v1583 = vmul.f32 %v1489, 1.442695
        %v1584 = vpow.pop %v1583
        %v1585 = vmul.f32 %v1490, 1.442695
        %v1586 = vpow.pop %v1585
        %v1587 = vmul.f32 %v1491, 1.442695
        %v1588 = vpow.pop %v1587
        %v1589 = vmul.f32 %v1492, 1.442695
        %v1590 = vpow.pop %v1589
        %v1591 = vmul.f32 %v1493, 1.442695
        %v1592 = vpow.pop %v1591
        %v1593 = vmul.f32 %v1494, 1.442695
        %v1594 = vpow.pop %v1593
        %v1595 = vmul.f32 %v1495, 1.442695
        %v1596 = vpow.pop %v1595
        %v1597 = vmul.f32 %v1496, 1.442695
        %v1598 = vpow.pop %v1597
        %v1599 = vmul.f32 %v1497, 1.442695
        %v1600 = vpow.pop %v1599
        %v1601 = vmul.f32 %v1498, 1.442695
        %v1602 = vpow.pop %v1601
        %v1603 = vmul.f32 %v1499, 1.442695
        %v1604 = vpow.pop %v1603
        %v1605 = vmul.f32 %v1500, 1.442695
        %v1606 = vpow.pop %v1605
        %v1607 = vmul.f32 %v1501, 1.442695
        %v1608 = vpow.pop %v1607
        %v1609 = vmul.f32 %v1502, 1.442695
        %v1610 = vpow.pop %v1609
        %v1611 = vmul.f32 %v1503, 1.442695
        %v1612 = vpow.pop %v1611
        %v1613 = vmul.f32 %v1504, 1.442695
        %v1614 = vpow.pop %v1613
        %v1615 = vmul.f32 %v1505, 1.442695
        %v1616 = vpow.pop %v1615
        %v1617 = vmul.f32 %v1506, 1.442695
        %v1618 = vpow.pop %v1617
        %v1619 = vmul.f32 %v1507, 1.442695
        %v1620 = vpow.pop %v1619
        %v1621 = vmul.f32 %v1508, 1.442695
        %v1622 = vpow.pop %v1621
        %v1623 = vmul.f32 %v1509, 1.442695
        %v1624 = vpow.pop %v1623
        %v1625 = vmul.f32 %v1510, 1.442695
        %v1626 = vpow.pop %v1625
        %v1627 = vmul.f32 %v1511, 1.442695
        %v1628 = vpow.pop %v1627
        %v1629 = vmul.f32 %v1512, 1.442695
        %v1630 = vpow.pop %v1629
        %v1631 = vmul.f32 %v1513, 1.442695
        %v1632 = vpow.pop %v1631
        %v1633 = vmul.f32 %v1514, 1.442695
        %v1634 = vpow.pop %v1633
        %v1635 = vmul.f32 %v1515, 1.442695
        %v1636 = vpow.pop %v1635
        %v1637 = vmul.f32 %v1516, 1.442695
        %v1638 = vpow.pop %v1637
        %v1639 = vmul.f32 %v1517, 1.442695
        %v1640 = vpow.pop %v1639
        %v1641 = vmul.f32 %v1518, 1.442695
        %v1642 = vpow.pop %v1641
        %v1643 = vmul.f32 %v1519, 1.442695
        %v1644 = vpow.pop %v1643
        %v1645 = vmul.f32 %v1520, 1.442695
        %v1646 = vpow.pop %v1645
        %v1647 = vmul.f32 %v1521, 1.442695
        %v1648 = vpow.pop %v1647
        %v1649 = vmul.f32 %v1522, 1.442695
        %v1650 = vpow.pop %v1649
        %v1651 = vadd.f32 %v1524, %v1528
        %v1652 = vadd.f32 %v1651, %v1532
        %v1653 = vadd.f32 %v1652, %v1536
        %v1654 = vadd.f32 %v1653, %v1540
        %v1655 = vadd.f32 %v1654, %v1544
        %v1656 = vadd.f32 %v1655, %v1548
        %v1657 = vadd.f32 %v1656, %v1552
        %v1658 = vadd.f32 %v1657, %v1556
        %v1659 = vadd.f32 %v1658, %v1560
        %v1660 = vadd.f32 %v1659, %v1564
        %v1661 = vadd.f32 %v1660, %v1568
        %v1662 = vadd.f32 %v1661, %v1572
        %v1663 = vadd.f32 %v1662, %v1576
        %v1664 = vadd.f32 %v1663, %v1580
        %v1665 = vadd.f32 %v1664, %v1584
        %v1666 = vadd.f32 %v1665, %v1588
        %v1667 = vadd.f32 %v1666, %v1592
        %v1668 = vadd.f32 %v1667, %v1596
        %v1669 = vadd.f32 %v1668, %v1600
        %v1670 = vadd.f32 %v1669, %v1604
        %v1671 = vadd.f32 %v1670, %v1608
        %v1672 = vadd.f32 %v1671, %v1612
        %v1673 = vadd.f32 %v1672, %v1616
        %v1674 = vadd.f32 %v1673, %v1620
        %v1675 = vadd.f32 %v1674, %v1624
        %v1676 = vadd.f32 %v1675, %v1628
        %v1677 = vadd.f32 %v1676, %v1632
        %v1678 = vadd.f32 %v1677, %v1636
        %v1679 = vadd.f32 %v1678, %v1640
        %v1680 = vadd.f32 %v1679, %v1644
        %v1681 = vadd.f32 %v1680, %v1648
        %v1682 = vrot.slane %v1681, 4
        %v1683 = vadd.f32 %v1681, %v1682
        %v1684 = vrot.slane %v1683, 2
        %v1685 = vadd.f32 %v1683, %v1684
        %v1686 = vrot.slane %v1685, 1
        %v1687 = vadd.f32 %v1685, %v1686
        %v1688 = vadd.f32 %v1526, %v1530
        %v1689 = vadd.f32 %v1688, %v1534
        %v1690 = vadd.f32 %v1689, %v1538
        %v1691 = vadd.f32 %v1690, %v1542
        %v1692 = vadd.f32 %v1691, %v1546
        %v1693 = vadd.f32 %v1692, %v1550
        %v1694 = vadd.f32 %v1693, %v1554
        %v1695 = vadd.f32 %v1694, %v1558
        %v1696 = vadd.f32 %v1695, %v1562
        %v1697 = vadd.f32 %v1696, %v1566
        %v1698 = vadd.f32 %v1697, %v1570
        %v1699 = vadd.f32 %v1698, %v1574
        %v1700 = vadd.f32 %v1699, %v1578
        %v1701 = vadd.f32 %v1700, %v1582
        %v1702 = vadd.f32 %v1701, %v1586
        %v1703 = vadd.f32 %v1702, %v1590
        %v1704 = vadd.f32 %v1703, %v1594
        %v1705 = vadd.f32 %v1704, %v1598
        %v1706 = vadd.f32 %v1705, %v1602
        %v1707 = vadd.f32 %v1706, %v1606
        %v1708 = vadd.f32 %v1707, %v1610
        %v1709 = vadd.f32 %v1708, %v1614
        %v1710 = vadd.f32 %v1709, %v1618
        %v1711 = vadd.f32 %v1710, %v1622
        %v1712 = vadd.f32 %v1711, %v1626
        %v1713 = vadd.f32 %v1712, %v1630
        %v1714 = vadd.f32 %v1713, %v1634
        %v1715 = vadd.f32 %v1714, %v1638
        %v1716 = vadd.f32 %v1715, %v1642
        %v1717 = vadd.f32 %v1716, %v1646
        %v1718 = vadd.f32 %v1717, %v1650
        %v1719 = vrot.slane %v1718, 4
        %v1720 = vadd.f32 %v1718, %v1719
        %v1721 = vrot.slane %v1720, 2
        %v1722 = vadd.f32 %v1720, %v1721
        %v1723 = vrot.slane %v1722, 1
        %v1724 = vadd.f32 %v1722, %v1723
        %v1725 = vrcp.pop %v1687
        %v1726 = vrcp.pop %v1724
        %v1727 = vstv %s1384
        %v1728 = vmul.f32 %v1727, %v1725
        %v1729 = vmul.f32 %v1727, %v1726
        %v1730 = vmul.f32 %v1178, %v1382
        %v1731 = vmul.f32 %v1180, %v1383
        %v1732 = vmul.f32 %v1182, %v1382
        %v1733 = vmul.f32 %v1184, %v1383
        %v1734 = vmul.f32 %v1186, %v1382
        %v1735 = vmul.f32 %v1188, %v1383
        %v1736 = vmul.f32 %v1190, %v1382
        %v1737 = vmul.f32 %v1192, %v1383
        %v1738 = vmul.f32 %v1194, %v1382
        %v1739 = vmul.f32 %v1196, %v1383
        %v1740 = vmul.f32 %v1198, %v1382
        %v1741 = vmul.f32 %v1200, %v1383
        %v1742 = vmul.f32 %v1202, %v1382
        %v1743 = vmul.f32 %v1204, %v1383
        %v1744 = vmul.f32 %v1206, %v1382
        %v1745 = vmul.f32 %v1208, %v1383
        %v1746 = vmul.f32 %v1210, %v1382
        %v1747 = vmul.f32 %v1212, %v1383
        %v1748 = vmul.f32 %v1214, %v1382
        %v1749 = vmul.f32 %v1216, %v1383
        %v1750 = vmul.f32 %v1218, %v1382
        %v1751 = vmul.f32 %v1220, %v1383
        %v1752 = vmul.f32 %v1222, %v1382
        %v1753 = vmul.f32 %v1224, %v1383
        %v1754 = vmul.f32 %v1226, %v1382
        %v1755 = vmul.f32 %v1228, %v1383
        %v1756 = vmul.f32 %v1230, %v1382
        %v1757 = vmul.f32 %v1232, %v1383
        %v1758 = vmul.f32 %v1234, %v1382
        %v1759 = vmul.f32 %v1236, %v1383
        %v1760 = vmul.f32 %v1238, %v1382
        %v1761 = vmul.f32 %v1240, %v1383
        %v1762 = vmul.f32 %v1242, %v1382
        %v1763 = vmul.f32 %v1244, %v1383
        %v1764 = vmul.f32 %v1246, %v1382
        %v1765 = vmul.f32 %v1248, %v1383
        %v1766 = vmul.f32 %v1250, %v1382
        %v1767 = vmul.f32 %v1252, %v1383
        %v1768 = vmul.f32 %v1254, %v1382
        %v1769 = vmul.f32 %v1256, %v1383
        %v1770 = vmul.f32 %v1258, %v1382
        %v1771 = vmul.f32 %v1260, %v1383
        %v1772 = vmul.f32 %v1262, %v1382
        %v1773 = vmul.f32 %v1264, %v1383
        %v1774 = vmul.f32 %v1266, %v1382
        %v1775 = vmul.f32 %v1268, %v1383
        %v1776 = vmul.f32 %v1270, %v1382
        %v1777 = vmul.f32 %v1272, %v1383
        %v1778 = vmul.f32 %v1274, %v1382
        %v1779 = vmul.f32 %v1276, %v1383
        %v1780 = vmul.f32 %v1278, %v1382
        %v1781 = vmul.f32 %v1280, %v1383
        %v1782 = vmul.f32 %v1282, %v1382
        %v1783 = vmul.f32 %v1284, %v1383
        %v1784 = vmul.f32 %v1286, %v1382
        %v1785 = vmul.f32 %v1288, %v1383
        %v1786 = vmul.f32 %v1290, %v1382
        %v1787 = vmul.f32 %v1292, %v1383
        %v1788 = vmul.f32 %v1294, %v1382
        %v1789 = vmul.f32 %v1296, %v1383
        %v1790 = vmul.f32 %v1298, %v1382
        %v1791 = vmul.f32 %v1300, %v1383
        %v1792 = vmul.f32 %v1302, %v1382
        %v1793 = vmul.f32 %v1304, %v1383
        %v1794 = vmul.f32 %v1524, %v1728
        %v1795 = vmul.f32 %v1526, %v1729
        %v1796 = vmul.f32 %v1528, %v1728
        %v1797 = vmul.f32 %v1530, %v1729
        %v1798 = vmul.f32 %v1532, %v1728
        %v1799 = vmul.f32 %v1534, %v1729
        %v1800 = vmul.f32 %v1536, %v1728
        %v1801 = vmul.f32 %v1538, %v1729
        %v1802 = vmul.f32 %v1540, %v1728
        %v1803 = vmul.f32 %v1542, %v1729
        %v1804 = vmul.f32 %v1544, %v1728
        %v1805 = vmul.f32 %v1546, %v1729
        %v1806 = vmul.f32 %v1548, %v1728
        %v1807 = vmul.f32 %v1550, %v1729
        %v1808 = vmul.f32 %v1552, %v1728
        %v1809 = vmul.f32 %v1554, %v1729
        %v1810 = vmul.f32 %v1556, %v1728
        %v1811 = vmul.f32 %v1558, %v1729
        %v1812 = vmul.f32 %v1560, %v1728
        %v1813 = vmul.f32 %v1562, %v1729
        %v1814 = vmul.f32 %v1564, %v1728
        %v1815 = vmul.f32 %v1566, %v1729
        %v1816 = vmul.f32 %v1568, %v1728
        %v1817 = vmul.f32 %v1570, %v1729
        %v1818 = vmul.f32 %v1572, %v1728
        %v1819 = vmul.f32 %v1574, %v1729
        %v1820 = vmul.f32 %v1576, %v1728
        %v1821 = vmul.f32 %v1578, %v1729
        %v1822 = vmul.f32 %v1580, %v1728
        %v1823 = vmul.f32 %v1582, %v1729
        %v1824 = vmul.f32 %v1584, %v1728
        %v1825 = vmul.f32 %v1586, %v1729
        %v1826 = vmul.f32 %v1588, %v1728
        %v1827 = vmul.f32 %v1590, %v1729
        %v1828 = vmul.f32 %v1592, %v1728
        %v1829 = vmul.f32 %v1594, %v1729
        %v1830 = vmul.f32 %v1596, %v1728
        %v1831 = vmul.f32 %v1598, %v1729
        %v1832 = vmul.f32 %v1600, %v1728
        %v1833 = vmul.f32 %v1602, %v1729
        %v1834 = vmul.f32 %v1604, %v1728
        %v1835 = vmul.f32 %v1606, %v1729
        %v1836 = vmul.f32 %v1608, %v1728
        %v1837 = vmul.f32 %v1610, %v1729
        %v1838 = vmul.f32 %v1612, %v1728
        %v1839 = vmul.f32 %v1614, %v1729
        %v1840 = vmul.f32 %v1616, %v1728
        %v1841 = vmul.f32 %v1618, %v1729
        %v1842 = vmul.f32 %v1620, %v1728
        %v1843 = vmul.f32 %v1622, %v1729
        %v1844 = vmul.f32 %v1624, %v1728
        %v1845 = vmul.f32 %v1626, %v1729
        %v1846 = vmul.f32 %v1628, %v1728
        %v1847 = vmul.f32 %v1630, %v1729
        %v1848 = vmul.f32 %v1632, %v1728
        %v1849 = vmul.f32 %v1634, %v1729
        %v1850 = vmul.f32 %v1636, %v1728
        %v1851 = vmul.f32 %v1638, %v1729
        %v1852 = vmul.f32 %v1640, %v1728
        %v1853 = vmul.f32 %v1642, %v1729
        %v1854 = vmul.f32 %v1644, %v1728
        %v1855 = vmul.f32 %v1646, %v1729
        %v1856 = vmul.f32 %v1648, %v1728
        %v1857 = vmul.f32 %v1650, %v1729
        %v1858 = vadd.f32 %v1730, %v1794
        %v1859 = vadd.f32 %v1731, %v1795
        %v1860 = vadd.f32 %v1732, %v1796
        %v1861 = vadd.f32 %v1733, %v1797
        %v1862 = vadd.f32 %v1734, %v1798
        %v1863 = vadd.f32 %v1735, %v1799
        %v1864 = vadd.f32 %v1736, %v1800
        %v1865 = vadd.f32 %v1737, %v1801
        %v1866 = vadd.f32 %v1738, %v1802
        %v1867 = vadd.f32 %v1739, %v1803
        %v1868 = vadd.f32 %v1740, %v1804
        %v1869 = vadd.f32 %v1741, %v1805
        %v1870 = vadd.f32 %v1742, %v1806
        %v1871 = vadd.f32 %v1743, %v1807
        %v1872 = vadd.f32 %v1744, %v1808
        %v1873 = vadd.f32 %v1745, %v1809
        %v1874 = vadd.f32 %v1746, %v1810
        %v1875 = vadd.f32 %v1747, %v1811
        %v1876 = vadd.f32 %v1748, %v1812
        %v1877 = vadd.f32 %v1749, %v1813
        %v1878 = vadd.f32 %v1750, %v1814
        %v1879 = vadd.f32 %v1751, %v1815
        %v1880 = vadd.f32 %v1752, %v1816
        %v1881 = vadd.f32 %v1753, %v1817
        %v1882 = vadd.f32 %v1754, %v1818
        %v1883 = vadd.f32 %v1755, %v1819
        %v1884 = vadd.f32 %v1756, %v1820
        %v1885 = vadd.f32 %v1757, %v1821
        %v1886 = vadd.f32 %v1758, %v1822
        %v1887 = vadd.f32 %v1759, %v1823
        %v1888 = vadd.f32 %v1760, %v1824
        %v1889 = vadd.f32 %v1761, %v1825
        %v1890 = vadd.f32 %v1762, %v1826
        %v1891 = vadd.f32 %v1763, %v1827
        %v1892 = vadd.f32 %v1764, %v1828
        %v1893 = vadd.f32 %v1765, %v1829
        %v1894 = vadd.f32 %v1766, %v1830
        %v1895 = vadd.f32 %v1767, %v1831
        %v1896 = vadd.f32 %v1768, %v1832
        %v1897 = vadd.f32 %v1769, %v1833
        %v1898 = vadd.f32 %v1770, %v1834
        %v1899 = vadd.f32 %v1771, %v1835
        %v1900 = vadd.f32 %v1772, %v1836
        %v1901 = vadd.f32 %v1773, %v1837
        %v1902 = vadd.f32 %v1774, %v1838
        %v1903 = vadd.f32 %v1775, %v1839
        %v1904 = vadd.f32 %v1776, %v1840
        %v1905 = vadd.f32 %v1777, %v1841
        %v1906 = vadd.f32 %v1778, %v1842
        %v1907 = vadd.f32 %v1779, %v1843
        %v1908 = vadd.f32 %v1780, %v1844
        %v1909 = vadd.f32 %v1781, %v1845
        %v1910 = vadd.f32 %v1782, %v1846
        %v1911 = vadd.f32 %v1783, %v1847
        %v1912 = vadd.f32 %v1784, %v1848
        %v1913 = vadd.f32 %v1785, %v1849
        %v1914 = vadd.f32 %v1786, %v1850
        %v1915 = vadd.f32 %v1787, %v1851
        %v1916 = vadd.f32 %v1788, %v1852
        %v1917 = vadd.f32 %v1789, %v1853
        %v1918 = vadd.f32 %v1790, %v1854
        %v1919 = vadd.f32 %v1791, %v1855
        %v1920 = vadd.f32 %v1792, %v1856
        %v1921 = vadd.f32 %v1793, %v1857
        %v1922 = vpack.c.bf16 %v1860, %v1858
        %v1923 = vpack.c.bf16 %v1861, %v1859
        %v1924 = vpack.c.bf16 %v1864, %v1862
        %v1925 = vpack.c.bf16 %v1865, %v1863
        %v1926 = vpack.c.bf16 %v1868, %v1866
        %v1927 = vpack.c.bf16 %v1869, %v1867
        %v1928 = vpack.c.bf16 %v1872, %v1870
        %v1929 = vpack.c.bf16 %v1873, %v1871
        %v1930 = vpack.c.bf16 %v1876, %v1874
        %v1931 = vpack.c.bf16 %v1877, %v1875
        %v1932 = vpack.c.bf16 %v1880, %v1878
        %v1933 = vpack.c.bf16 %v1881, %v1879
        %v1934 = vpack.c.bf16 %v1884, %v1882
        %v1935 = vpack.c.bf16 %v1885, %v1883
        %v1936 = vpack.c.bf16 %v1888, %v1886
        %v1937 = vpack.c.bf16 %v1889, %v1887
        %v1938 = vpack.c.bf16 %v1892, %v1890
        %v1939 = vpack.c.bf16 %v1893, %v1891
        %v1940 = vpack.c.bf16 %v1896, %v1894
        %v1941 = vpack.c.bf16 %v1897, %v1895
        %v1942 = vpack.c.bf16 %v1900, %v1898
        %v1943 = vpack.c.bf16 %v1901, %v1899
        %v1944 = vpack.c.bf16 %v1904, %v1902
        %v1945 = vpack.c.bf16 %v1905, %v1903
        %v1946 = vpack.c.bf16 %v1908, %v1906
        %v1947 = vpack.c.bf16 %v1909, %v1907
        %v1948 = vpack.c.bf16 %v1912, %v1910
        %v1949 = vpack.c.bf16 %v1913, %v1911
        %v1950 = vpack.c.bf16 %v1916, %v1914
        %v1951 = vpack.c.bf16 %v1917, %v1915
        %v1952 = vpack.c.bf16 %v1920, %v1918
        %v1953 = vpack.c.bf16 %v1921, %v1919
        %v1956 = vunpack.c.l.b16 %v410
        %v1957 = vunpack.c.h.b16 %v410
        %v1958 = vunpack.c.l.b16 %v411
        %v1959 = vunpack.c.h.b16 %v411
        %v1960 = vpack.c.b16 %v1958, %v1956
        %v1961 = vpack.c.b16 %v1959, %v1957
        %1964 = vmatprep.subr.bf16.mxu0 %v1923
        %1965 = vmatpush1.bf16.msra.mxu0 %v1922
        %1966 = vmatprep.subr.bf16.mxu0 %v1925
        %1967 = vmatpush1.bf16.msra.mxu0 %v1924
        %1968 = vmatprep.subr.bf16.mxu0 %v1927
        %1969 = vmatpush1.bf16.msra.mxu0 %v1926
        %1970 = vmatprep.subr.bf16.mxu0 %v1929
        %1971 = vmatpush1.bf16.msra.mxu0 %v1928
        %1972 = vmatprep.subr.bf16.mxu0 %v1931
        %1973 = vmatpush1.bf16.msra.mxu0 %v1930
        %1974 = vmatprep.subr.bf16.mxu0 %v1933
        %1975 = vmatpush1.bf16.msra.mxu0 %v1932
        %1976 = vmatprep.subr.bf16.mxu0 %v1935
        %1977 = vmatpush1.bf16.msra.mxu0 %v1934
        %1978 = vmatprep.subr.bf16.mxu0 %v1937
        %1979 = vmatpush1.bf16.msra.mxu0 %v1936
        %1980 = vmatprep.subr.bf16.mxu0 %v1939
        %1981 = vmatpush1.bf16.msra.mxu0 %v1938
        %1982 = vmatprep.subr.bf16.mxu0 %v1941
        %1983 = vmatpush1.bf16.msra.mxu0 %v1940
        %1984 = vmatprep.subr.bf16.mxu0 %v1943
        %1985 = vmatpush1.bf16.msra.mxu0 %v1942
        %1986 = vmatprep.subr.bf16.mxu0 %v1945
        %1987 = vmatpush1.bf16.msra.mxu0 %v1944
        %1988 = vmatprep.subr.bf16.mxu0 %v1947
        %1989 = vmatpush1.bf16.msra.mxu0 %v1946
        %1990 = vmatprep.subr.bf16.mxu0 %v1949
        %1991 = vmatpush1.bf16.msra.mxu0 %v1948
        %1992 = vmatprep.subr.bf16.mxu0 %v1951
        %1993 = vmatpush1.bf16.msra.mxu0 %v1950
        %1994 = vmatprep.subr.bf16.mxu0 %v1953
        %1995 = vmatpush1.bf16.msra.mxu0 %v1952
        %1996 = vmatprep.mubr.bf16.mxu0 %v1961
        %1997 = vmatmul.mubr.bf16.gmra.mrb[0].mxu0 %v1960
        %v1998 = vpop.f32.mrb[0].mxu0
        %v1999 = vadd.f32 %v412, %v1998
        %v2000 = vpop.f32.mrb[0].mxu0
        %v2001 = vadd.f32 %v413, %v2000
        %v2002 = vpop.f32.mrb[0].mxu0
        %v2003 = vadd.f32 %v414, %v2002
        %v2004 = vpop.f32.mrb[0].mxu0
        %v2005 = vadd.f32 %v415, %v2004
        %2006 = vdwg.mxu0
        %2007 = vst [vmem:[%s312] sm:$0xff] %v1999
        %2008 = vst [vmem:[%s312 + $0x8] sm:$0xff] %v2001
        %2009 = vst [vmem:[%s312 + $0x10] sm:$0xff] %v2003
        %2010 = vst [vmem:[%s312 + $0x18] sm:$0xff] %v2005
        %s2011 = sand.u32 %s171, 1
        %s2012 = scalar_lea.sflag [#allocation3], %s2011
        %s2013 = sand.u32 %s171, 1
        %s2014 = smul.addr %s2013, 32
        %s2015 = scalar_lea.vmem [#allocation5], %s2014
        // Predicated region
        $region45: #{tpu_custom_call.1} parent=39 // pred_check
          %p2016 = pneg %p181
        $region46: #{tpu_custom_call.1} parent=39 // pred_check_branch
          %2018 = sbr.rel (%p2016) target = $region48
        $region47: #{tpu_custom_call.1} parent=39 // pred_region
          %s2019 = smul.u32 2, %s25
          %s2021 = ssub.s32 512, 512
          %2022 = vsyncadd %s2012, %s2021
          %s2023 = smul.addr %s24, 4
          %s2024 = sadd.s32 %s2019, %s2023
          %s2025 = smul.addr %s2024, 128
          %s2026 = scalar_lea.hbm %s5, %s2025
          %s2027 = sshll.u32 %s2015, 4
          %s2028 = int_to_ptr.vmem [resolvable:$true] %s2027
          %2033 = dma.vmem_to_hbm [thread:$0]  %s2028, 512, %s2026, %s2012, 256, 256, 16
        $region48: #{tpu_custom_call.1} parent=39 // pred_fallthru
          _
      $region40: #{tpu_custom_call.1} parent=5 // pred_fallthru
        _
      %p2034 = scmp.le.s32.totalorder 2, %s15
      // Predicated region
      $region49: #{tpu_custom_call.1} parent=5 // pred_check
        %p2035 = pneg %p2034
      $region50: #{tpu_custom_call.1} parent=5 // pred_check_branch
        %2037 = sbr.rel (%p2035) target = $region52
      $region51: #{tpu_custom_call.1} parent=5 // pred_region
        %s2038 = ssub.s32 %s15, 2
        // Predicated region
        $region53: #{tpu_custom_call.1} parent=51 // pred_check
          %p2039 = pneg %p187
        $region54: #{tpu_custom_call.1} parent=51 // pred_check_branch
          %2041 = sbr.rel (%p2039) target = $region56
        $region55: #{tpu_custom_call.1} parent=51 // pred_region
          %s2042 = sand.u32 %s172, 1
          %s2043 = scalar_lea.sflag [#allocation3], %s2042
          %s2044 = sand.u32 %s172, 1
          %s2045 = smul.addr %s2044, 32
          %s2046 = scalar_lea.vmem [#allocation5], %s2045
          %2047 = dma.done %s2043, 512
        $region56: #{tpu_custom_call.1} parent=51 // pred_fallthru
          _
      $region52: #{tpu_custom_call.1} parent=5 // pred_fallthru
        _
    $region6: #{tpu_custom_call.1} parent=1 // loop_footer
      %s19 = sadd.s32 1, %s15
    $region7: #{tpu_custom_call.1} parent=1 // loop_footer_branch
      %14 = sbr.rel target = $region3
    $region8: #{tpu_custom_call.1} parent=1 // loop_exit
      _
    %2048 = vsyncpa [#allocation3], 1
    %s2049 = scalar_lea.sflag [#allocation3], 1
    %2050 = vsyncpa %s2049, 1
    %2051 = vsyncpa [#allocation4], 1
    %s2052 = scalar_lea.sflag [#allocation4], 1
    %2053 = vsyncpa %s2052, 1

</llo_original>
